<compile_context>
chip_gen: v5e
topology: v5e:2x2
jax: 0.10.0
libtpu: 0.0.40
codegen_flags: <defaults>
</compile_context>

<pallas_src>
import math
import jax
import jax.numpy as jnp
from jax.experimental import pallas as pl
from jax.experimental.pallas import tpu as pltpu

# ---- tiny, deterministic synthetic BERT config (no checkpoint loading) ----
VOCAB = 50
MAX_POS = 16
HIDDEN = 32
NUM_HEADS = 4
HEAD_DIM = HIDDEN // NUM_HEADS
INTERMEDIATE = 64
NUM_LAYERS = 2
LN_EPS = 1e-12


def _layer_norm(x, g, b, eps=LN_EPS):
    mu = jnp.mean(x, axis=-1, keepdims=True)
    var = jnp.mean(jnp.square(x - mu), axis=-1, keepdims=True)
    return (x - mu) * jax.lax.rsqrt(var + eps) * g + b


# --------------------------- Pallas kernel -----------------------------------
def bert_encoder_kernel(x_ref, mask_ref,
                        wqkv_ref, bqkv_ref, wo_ref, bo_ref,
                        ln1g_ref, ln1b_ref,
                        w1_ref, b1_ref, w2_ref, b2_ref,
                        ln2g_ref, ln2b_ref,
                        out_ref, h_scr):
    layer = pl.program_id(0)
    B, S, H = h_scr.shape

    # load the embedded input into the resident carry once
    @pl.when(layer == 0)
    def _():
        h_scr[...] = x_ref[...]

    x = h_scr[...]                                  # (B, S, H)
    x2 = x.reshape(B * S, H)

    # ---- self attention: fused QKV projection (one MXU push), bias added once
    qkv = (jnp.dot(x2, wqkv_ref[...], preferred_element_type=jnp.float32)
           + bqkv_ref[...]).reshape(B, S, 3 * H)    # lanes: [q | k | v]

    attn_bias = ((1.0 - mask_ref[...]) * -10000.0)[:, None, :]   # (B, 1, Sk), once
    scale = 1.0 / math.sqrt(HEAD_DIM)

    # TODO(synk): head-batched attention (heads folded onto the sublane axis)
    # needs a (0,2,1,3) transpose Mosaic does not lower; static lane slices used.
    ctx_heads = []
    for h in range(NUM_HEADS):                      # static unrolled head loop
        qh = qkv[:, :, h * HEAD_DIM:(h + 1) * HEAD_DIM]
        kh = qkv[:, :, H + h * HEAD_DIM:H + (h + 1) * HEAD_DIM]
        vh = qkv[:, :, 2 * H + h * HEAD_DIM:2 * H + (h + 1) * HEAD_DIM]
        scores = jnp.einsum('bqd,bkd->bqk', qh, kh,
                            preferred_element_type=jnp.float32) * scale + attn_bias
        scores = scores - jnp.max(scores, axis=-1, keepdims=True)
        p = jnp.exp(scores)
        p = p * pl.reciprocal(jnp.sum(p, axis=-1, keepdims=True), approx=True)
        ctx_heads.append(jnp.einsum('bqk,bkd->bqd', p, vh,
                                    preferred_element_type=jnp.float32))

    # reassemble full-width context, single K=H output projection
    ctx = jnp.concatenate(ctx_heads, axis=-1).reshape(B * S, H)
    attn_out = (jnp.dot(ctx, wo_ref[...], preferred_element_type=jnp.float32)
                + bo_ref[...]).reshape(B, S, H)

    # ---- add & norm ----
    ln1 = _layer_norm(x + attn_out, ln1g_ref[...], ln1b_ref[...])

    # ---- feed forward ----
    h1 = jnp.dot(ln1.reshape(B * S, H), w1_ref[...],
                 preferred_element_type=jnp.float32) + b1_ref[...]
    # TODO(synk): HF BERT uses exact erf-GELU; tanh approximation used here.
    h1 = jax.nn.gelu(h1, approximate=True)
    ffn_out = (jnp.dot(h1, w2_ref[...], preferred_element_type=jnp.float32)
               + b2_ref[...]).reshape(B, S, H)

    h_new = _layer_norm(ln1 + ffn_out, ln2g_ref[...], ln2b_ref[...])
    h_scr[...] = h_new                              # carry to next layer

    # fused final pooling: torch.mean(last_hidden_state, dim=1) (unmasked mean)
    @pl.when(layer == pl.num_programs(0) - 1)
    def _():
        out_ref[...] = jnp.mean(h_new, axis=1)


# --------------------------- pallas_call wrapper ------------------------------
def bert_encoder(h0, mask, enc):
    """Run all encoder layers + mean pooling in a single pallas_call."""
    B, S, H = h0.shape

    def fixed(shape):                       # same block every grid step
        nd = len(shape)
        return pl.BlockSpec(shape, lambda l, _n=nd: (0,) * _n)

    def per_layer(shape):                   # stacked (L, *shape); pick layer l
        nd = len(shape)
        return pl.BlockSpec((None,) + tuple(shape),
                            lambda l, _n=nd: (l,) + (0,) * _n)

    in_specs = [
        fixed((B, S, H)),                   # embedded input
        fixed((B, S)),                      # attention mask
        per_layer((H, 3 * H)),              # fused qkv weight
        per_layer((1, 3 * H)),              # fused qkv bias
        per_layer((H, H)),                  # wo
        per_layer((1, H)),                  # bo
        per_layer((1, H)),                  # ln1 gamma
        per_layer((1, H)),                  # ln1 beta
        per_layer((H, INTERMEDIATE)),       # w1
        per_layer((1, INTERMEDIATE)),       # b1
        per_layer((INTERMEDIATE, H)),       # w2
        per_layer((1, H)),                  # b2
        per_layer((1, H)),                  # ln2 gamma
        per_layer((1, H)),                  # ln2 beta
    ]

    return pl.pallas_call(
        bert_encoder_kernel,
        grid=(NUM_LAYERS,),
        in_specs=in_specs,
        out_specs=pl.BlockSpec((B, H), lambda l: (0, 0)),
        out_shape=jax.ShapeDtypeStruct((B, H), jnp.float32),
        scratch_shapes=[pltpu.VMEM((B, S, H), jnp.float32)],   # resident hidden state
        compiler_params=pltpu.CompilerParams(
            dimension_semantics=("arbitrary",)),                # sequential layer carry
    )(h0, mask,
      enc['wqkv'], enc['bqkv'], enc['wo'], enc['bo'],
      enc['ln1_g'], enc['ln1_b'],
      enc['w1'], enc['b1'], enc['w2'], enc['b2'],
      enc['ln2_g'], enc['ln2_b'])


# --------------------------- params & forward ---------------------------------
def init_params(key):
    def dense(k, shape):
        return (0.02 * jax.random.normal(k, shape)).astype(jnp.float32)

    keys = jax.random.split(key, 3 + NUM_LAYERS)
    params = {
        'word_emb': dense(keys[0], (VOCAB, HIDDEN)),
        'pos_emb': dense(keys[1], (MAX_POS, HIDDEN)),
        'tok_emb': dense(keys[2], (2, HIDDEN)),
        'emb_ln_g': jnp.ones((HIDDEN,), jnp.float32),
        'emb_ln_b': jnp.zeros((HIDDEN,), jnp.float32),
    }

    acc = {k: [] for k in ('wqkv', 'bqkv', 'wo', 'bo', 'ln1_g', 'ln1_b',
                           'w1', 'b1', 'w2', 'b2', 'ln2_g', 'ln2_b')}
    for li in range(NUM_LAYERS):
        lk = jax.random.split(keys[3 + li], 6)
        wq = dense(lk[0], (HIDDEN, HIDDEN))
        wk = dense(lk[1], (HIDDEN, HIDDEN))
        wv = dense(lk[2], (HIDDEN, HIDDEN))
        acc['wqkv'].append(jnp.concatenate([wq, wk, wv], axis=1))   # fused (H, 3H)
        acc['bqkv'].append(jnp.zeros((1, 3 * HIDDEN), jnp.float32))
        acc['wo'].append(dense(lk[3], (HIDDEN, HIDDEN)))
        acc['bo'].append(jnp.zeros((1, HIDDEN), jnp.float32))
        acc['ln1_g'].append(jnp.ones((1, HIDDEN), jnp.float32))
        acc['ln1_b'].append(jnp.zeros((1, HIDDEN), jnp.float32))
        acc['w1'].append(dense(lk[4], (HIDDEN, INTERMEDIATE)))
        acc['b1'].append(jnp.zeros((1, INTERMEDIATE), jnp.float32))
        acc['w2'].append(dense(lk[5], (INTERMEDIATE, HIDDEN)))
        acc['b2'].append(jnp.zeros((1, HIDDEN), jnp.float32))
        acc['ln2_g'].append(jnp.ones((1, HIDDEN), jnp.float32))
        acc['ln2_b'].append(jnp.zeros((1, HIDDEN), jnp.float32))

    params['enc'] = {k: jnp.stack(v, axis=0) for k, v in acc.items()}
    return params


def bert_forward(params, input_ids, attention_mask):
    """Equivalent of BERTModel.forward((input_ids, masks)) -> mean over seq dim."""
    B, S = input_ids.shape
    positions = jnp.arange(S)
    # embedding gathers + embedding LayerNorm are plain-JAX glue
    emb = (params['word_emb'][input_ids]
           + params['pos_emb'][positions][None, :, :]
           + params['tok_emb'][0][None, None, :])
    h0 = _layer_norm(emb, params['emb_ln_g'], params['emb_ln_b'])
    return bert_encoder(h0.astype(jnp.float32),
                        attention_mask.astype(jnp.float32),
                        params['enc'])


if __name__ == "__main__":
    key = jax.random.PRNGKey(0)
    pkey, ikey = jax.random.split(key)
    params = init_params(pkey)

    B, S = 2, 8
    input_ids = jax.random.randint(ikey, (B, S), 0, VOCAB, dtype=jnp.int32)
    attention_mask = jnp.array([[1, 1, 1, 1, 1, 1, 1, 1],
                                [1, 1, 1, 1, 1, 0, 0, 0]], dtype=jnp.int32)

    forward = jax.jit(bert_forward)
    out_mean = forward(params, input_ids, attention_mask)
    jax.block_until_ready(out_mean)
    assert out_mean.shape == (B, HIDDEN) and out_mean.dtype == jnp.float32
    assert bool(jnp.all(jnp.isfinite(out_mean)))
    print("KERNEL_OK")
</pallas_src>

<mosaic_0001>
module attributes {stable_mosaic.version = 11 : i64} {
  func.func @bert_encoder_kernel(%arg0: i32, %arg1: memref<2x8x32xf32, #tpu.memory_space<vmem>>, %arg2: memref<2x8xf32, #tpu.memory_space<vmem>>, %arg3: memref<1x32x96xf32, #tpu.memory_space<vmem>>, %arg4: memref<1x1x96xf32, #tpu.memory_space<vmem>>, %arg5: memref<1x32x32xf32, #tpu.memory_space<vmem>>, %arg6: memref<1x1x32xf32, #tpu.memory_space<vmem>>, %arg7: memref<1x1x32xf32, #tpu.memory_space<vmem>>, %arg8: memref<1x1x32xf32, #tpu.memory_space<vmem>>, %arg9: memref<1x32x64xf32, #tpu.memory_space<vmem>>, %arg10: memref<1x1x64xf32, #tpu.memory_space<vmem>>, %arg11: memref<1x64x32xf32, #tpu.memory_space<vmem>>, %arg12: memref<1x1x32xf32, #tpu.memory_space<vmem>>, %arg13: memref<1x1x32xf32, #tpu.memory_space<vmem>>, %arg14: memref<1x1x32xf32, #tpu.memory_space<vmem>>, %arg15: memref<2x32xf32, #tpu.memory_space<vmem>>, %arg16: memref<2x8x32xf32, #tpu.memory_space<vmem>>) attributes {dimension_semantics = [#tpu.dimension_semantics<arbitrary>], iteration_bounds = array<i64: 2>, scalar_prefetch = 0 : i64, scratch_operands = 1 : i64, tpu.core_type = #tpu.core_type<tc>, window_params = [{pipeline_mode = #tpu.pipeline_mode<synchronous>, transform_indices = @transform_0, window_bounds = array<i64: 2, 8, 32>}, {pipeline_mode = #tpu.pipeline_mode<synchronous>, transform_indices = @transform_1, window_bounds = array<i64: 2, 8>}, {transform_indices = @transform_2, window_bounds = array<i64: 1, 32, 96>}, {transform_indices = @transform_3, window_bounds = array<i64: 1, 1, 96>}, {transform_indices = @transform_4, window_bounds = array<i64: 1, 32, 32>}, {transform_indices = @transform_5, window_bounds = array<i64: 1, 1, 32>}, {transform_indices = @transform_6, window_bounds = array<i64: 1, 1, 32>}, {transform_indices = @transform_7, window_bounds = array<i64: 1, 1, 32>}, {transform_indices = @transform_8, window_bounds = array<i64: 1, 32, 64>}, {transform_indices = @transform_9, window_bounds = array<i64: 1, 1, 64>}, {transform_indices = @transform_10, window_bounds = array<i64: 1, 64, 32>}, {transform_indices = @transform_11, window_bounds = array<i64: 1, 1, 32>}, {transform_indices = @transform_12, window_bounds = array<i64: 1, 1, 32>}, {transform_indices = @transform_13, window_bounds = array<i64: 1, 1, 32>}, {pipeline_mode = #tpu.pipeline_mode<synchronous>, transform_indices = @transform_14, window_bounds = array<i64: 2, 32>}]} {
    %c0_i32 = arith.constant 0 : i32
    %0 = arith.cmpi eq, %arg0, %c0_i32 : i32
    %1 = arith.extui %0 : i1 to i32
    %c0_i32_0 = arith.constant 0 : i32
    %2 = arith.cmpi ne, %1, %c0_i32_0 : i32
    scf.if %2 {
      %c0_84 = arith.constant 0 : index
      %c0_85 = arith.constant 0 : index
      %c0_86 = arith.constant 0 : index
      %196 = vector.load %arg1[%c0_84, %c0_85, %c0_86] : memref<2x8x32xf32, #tpu.memory_space<vmem>>, vector<2x8x32xf32>
      %c0_87 = arith.constant 0 : index
      %c0_88 = arith.constant 0 : index
      %c0_89 = arith.constant 0 : index
      %197 = vector.load %arg16[%c0_87, %c0_88, %c0_89] : memref<2x8x32xf32, #tpu.memory_space<vmem>>, vector<2x8x32xf32>
      tpu.vector_store %arg16[%c0_87, %c0_88, %c0_89], %196 {strides = array<i32>} : memref<2x8x32xf32, #tpu.memory_space<vmem>>, vector<2x8x32xf32>,
    } else {
    }
    %c0 = arith.constant 0 : index
    %c0_1 = arith.constant 0 : index
    %c0_2 = arith.constant 0 : index
    %3 = vector.load %arg16[%c0, %c0_1, %c0_2] : memref<2x8x32xf32, #tpu.memory_space<vmem>>, vector<2x8x32xf32>
    %4 = vector.shape_cast %3 : vector<2x8x32xf32> to vector<16x32xf32>
    %c0_3 = arith.constant 0 : index
    %c0_4 = arith.constant 0 : index
    %c0_5 = arith.constant 0 : index
    %5 = vector.load %arg3[%c0_3, %c0_4, %c0_5] : memref<1x32x96xf32, #tpu.memory_space<vmem>>, vector<1x32x96xf32>
    %6 = vector.shape_cast %5 : vector<1x32x96xf32> to vector<32x96xf32>
    %cst = arith.constant dense<0.000000e+00> : vector<16x96xf32>
    %7 = tpu.matmul %4, %6, %cst {dimension_numbers = #tpu.dot_dimension_numbers<[1], [0], [0], [1], [0, 0, 1, 1], [], []>} : vector<16x32xf32>, vector<32x96xf32>, vector<16x96xf32> -> vector<16x96xf32>
    %c0_6 = arith.constant 0 : index
    %c0_7 = arith.constant 0 : index
    %c0_8 = arith.constant 0 : index
    %8 = vector.load %arg4[%c0_6, %c0_7, %c0_8] : memref<1x1x96xf32, #tpu.memory_space<vmem>>, vector<1x1x96xf32>
    %9 = vector.shape_cast %8 : vector<1x1x96xf32> to vector<1x96xf32>
    %10 = vector.broadcast %9 : vector<1x96xf32> to vector<16x96xf32>
    %11 = arith.addf %7, %10 : vector<16x96xf32>
    %12 = vector.shape_cast %11 : vector<16x96xf32> to vector<2x8x96xf32>
    %c0_9 = arith.constant 0 : index
    %c0_10 = arith.constant 0 : index
    %13 = vector.load %arg2[%c0_9, %c0_10] : memref<2x8xf32, #tpu.memory_space<vmem>>, vector<2x8xf32>
    %cst_11 = arith.constant 1.000000e+00 : f32
    %14 = vector.broadcast %cst_11 : f32 to vector<2x8xf32>
    %15 = arith.subf %14, %13 : vector<2x8xf32>
    %cst_12 = arith.constant -1.000000e+04 : f32
    %16 = vector.broadcast %cst_12 : f32 to vector<2x8xf32>
    %17 = arith.mulf %15, %16 : vector<2x8xf32>
    %18 = vector.shape_cast %17 : vector<2x8xf32> to vector<2x1x8xf32>
    %19 = vector.extract_strided_slice %12 {offsets = [0, 0, 0], sizes = [2, 8, 8], strides = [1, 1, 1]} : vector<2x8x96xf32> to vector<2x8x8xf32>
    %20 = vector.extract_strided_slice %12 {offsets = [0, 0, 32], sizes = [2, 8, 8], strides = [1, 1, 1]} : vector<2x8x96xf32> to vector<2x8x8xf32>
    %21 = vector.extract_strided_slice %12 {offsets = [0, 0, 64], sizes = [2, 8, 8], strides = [1, 1, 1]} : vector<2x8x96xf32> to vector<2x8x8xf32>
    "tpu.trace_start"() <{level = 10 : i32, message = "bqd,bkd->bqk"}> : () -> ()
    %cst_13 = arith.constant dense<0.000000e+00> : vector<2x8x8xf32>
    %22 = tpu.matmul %19, %20, %cst_13 {dimension_numbers = #tpu.dot_dimension_numbers<[2], [2], [1], [1], [0, 0, 0, 1, 1, 1], [0], [0]>} : vector<2x8x8xf32>, vector<2x8x8xf32>, vector<2x8x8xf32> -> vector<2x8x8xf32>
    "tpu.trace_stop"() : () -> ()
    %cst_14 = arith.constant 0.353553385 : f32
    %23 = vector.broadcast %cst_14 : f32 to vector<2x8x8xf32>
    %24 = arith.mulf %22, %23 : vector<2x8x8xf32>
    %25 = vector.broadcast %18 : vector<2x1x8xf32> to vector<2x8x8xf32>
    %26 = arith.addf %24, %25 : vector<2x8x8xf32>
    %cst_15 = arith.constant dense<0xFF800000> : vector<2x8xf32>
    %27 = vector.multi_reduction <maximumf>, %26, %cst_15 [2] : vector<2x8x8xf32> to vector<2x8xf32>
    %28 = vector.shape_cast %27 : vector<2x8xf32> to vector<2x8x1xf32>
    %29 = vector.broadcast %28 : vector<2x8x1xf32> to vector<2x8x8xf32>
    %30 = arith.subf %26, %29 : vector<2x8x8xf32>
    %31 = math.exp %30 : vector<2x8x8xf32>
    %cst_16 = arith.constant dense<0.000000e+00> : vector<2x8xf32>
    %32 = vector.multi_reduction <add>, %31, %cst_16 [2] : vector<2x8x8xf32> to vector<2x8xf32>
    %33 = vector.shape_cast %32 : vector<2x8xf32> to vector<2x8x1xf32>
    %34 = tpu.reciprocal %33 {approx = true} : vector<2x8x1xf32> -> vector<2x8x1xf32>
    %35 = vector.broadcast %34 : vector<2x8x1xf32> to vector<2x8x8xf32>
    %36 = arith.mulf %31, %35 : vector<2x8x8xf32>
    "tpu.trace_start"() <{level = 10 : i32, message = "bqk,bkd->bqd"}> : () -> ()
    %cst_17 = arith.constant dense<0.000000e+00> : vector<2x8x8xf32>
    %37 = tpu.matmul %36, %21, %cst_17 {dimension_numbers = #tpu.dot_dimension_numbers<[2], [1], [1], [2], [0, 0, 0, 1, 1, 2], [0], [0]>} : vector<2x8x8xf32>, vector<2x8x8xf32>, vector<2x8x8xf32> -> vector<2x8x8xf32>
    "tpu.trace_stop"() : () -> ()
    %38 = vector.extract_strided_slice %12 {offsets = [0, 0, 8], sizes = [2, 8, 8], strides = [1, 1, 1]} : vector<2x8x96xf32> to vector<2x8x8xf32>
    %39 = vector.extract_strided_slice %12 {offsets = [0, 0, 40], sizes = [2, 8, 8], strides = [1, 1, 1]} : vector<2x8x96xf32> to vector<2x8x8xf32>
    %40 = vector.extract_strided_slice %12 {offsets = [0, 0, 72], sizes = [2, 8, 8], strides = [1, 1, 1]} : vector<2x8x96xf32> to vector<2x8x8xf32>
    "tpu.trace_start"() <{level = 10 : i32, message = "bqd,bkd->bqk"}> : () -> ()
    %cst_18 = arith.constant dense<0.000000e+00> : vector<2x8x8xf32>
    %41 = tpu.matmul %38, %39, %cst_18 {dimension_numbers = #tpu.dot_dimension_numbers<[2], [2], [1], [1], [0, 0, 0, 1, 1, 1], [0], [0]>} : vector<2x8x8xf32>, vector<2x8x8xf32>, vector<2x8x8xf32> -> vector<2x8x8xf32>
    "tpu.trace_stop"() : () -> ()
    %cst_19 = arith.constant 0.353553385 : f32
    %42 = vector.broadcast %cst_19 : f32 to vector<2x8x8xf32>
    %43 = arith.mulf %41, %42 : vector<2x8x8xf32>
    %44 = vector.broadcast %18 : vector<2x1x8xf32> to vector<2x8x8xf32>
    %45 = arith.addf %43, %44 : vector<2x8x8xf32>
    %cst_20 = arith.constant dense<0xFF800000> : vector<2x8xf32>
    %46 = vector.multi_reduction <maximumf>, %45, %cst_20 [2] : vector<2x8x8xf32> to vector<2x8xf32>
    %47 = vector.shape_cast %46 : vector<2x8xf32> to vector<2x8x1xf32>
    %48 = vector.broadcast %47 : vector<2x8x1xf32> to vector<2x8x8xf32>
    %49 = arith.subf %45, %48 : vector<2x8x8xf32>
    %50 = math.exp %49 : vector<2x8x8xf32>
    %cst_21 = arith.constant dense<0.000000e+00> : vector<2x8xf32>
    %51 = vector.multi_reduction <add>, %50, %cst_21 [2] : vector<2x8x8xf32> to vector<2x8xf32>
    %52 = vector.shape_cast %51 : vector<2x8xf32> to vector<2x8x1xf32>
    %53 = tpu.reciprocal %52 {approx = true} : vector<2x8x1xf32> -> vector<2x8x1xf32>
    %54 = vector.broadcast %53 : vector<2x8x1xf32> to vector<2x8x8xf32>
    %55 = arith.mulf %50, %54 : vector<2x8x8xf32>
    "tpu.trace_start"() <{level = 10 : i32, message = "bqk,bkd->bqd"}> : () -> ()
    %cst_22 = arith.constant dense<0.000000e+00> : vector<2x8x8xf32>
    %56 = tpu.matmul %55, %40, %cst_22 {dimension_numbers = #tpu.dot_dimension_numbers<[2], [1], [1], [2], [0, 0, 0, 1, 1, 2], [0], [0]>} : vector<2x8x8xf32>, vector<2x8x8xf32>, vector<2x8x8xf32> -> vector<2x8x8xf32>
    "tpu.trace_stop"() : () -> ()
    %57 = vector.extract_strided_slice %12 {offsets = [0, 0, 16], sizes = [2, 8, 8], strides = [1, 1, 1]} : vector<2x8x96xf32> to vector<2x8x8xf32>
    %58 = vector.extract_strided_slice %12 {offsets = [0, 0, 48], sizes = [2, 8, 8], strides = [1, 1, 1]} : vector<2x8x96xf32> to vector<2x8x8xf32>
    %59 = vector.extract_strided_slice %12 {offsets = [0, 0, 80], sizes = [2, 8, 8], strides = [1, 1, 1]} : vector<2x8x96xf32> to vector<2x8x8xf32>
    "tpu.trace_start"() <{level = 10 : i32, message = "bqd,bkd->bqk"}> : () -> ()
    %cst_23 = arith.constant dense<0.000000e+00> : vector<2x8x8xf32>
    %60 = tpu.matmul %57, %58, %cst_23 {dimension_numbers = #tpu.dot_dimension_numbers<[2], [2], [1], [1], [0, 0, 0, 1, 1, 1], [0], [0]>} : vector<2x8x8xf32>, vector<2x8x8xf32>, vector<2x8x8xf32> -> vector<2x8x8xf32>
    "tpu.trace_stop"() : () -> ()
    %cst_24 = arith.constant 0.353553385 : f32
    %61 = vector.broadcast %cst_24 : f32 to vector<2x8x8xf32>
    %62 = arith.mulf %60, %61 : vector<2x8x8xf32>
    %63 = vector.broadcast %18 : vector<2x1x8xf32> to vector<2x8x8xf32>
    %64 = arith.addf %62, %63 : vector<2x8x8xf32>
    %cst_25 = arith.constant dense<0xFF800000> : vector<2x8xf32>
    %65 = vector.multi_reduction <maximumf>, %64, %cst_25 [2] : vector<2x8x8xf32> to vector<2x8xf32>
    %66 = vector.shape_cast %65 : vector<2x8xf32> to vector<2x8x1xf32>
    %67 = vector.broadcast %66 : vector<2x8x1xf32> to vector<2x8x8xf32>
    %68 = arith.subf %64, %67 : vector<2x8x8xf32>
    %69 = math.exp %68 : vector<2x8x8xf32>
    %cst_26 = arith.constant dense<0.000000e+00> : vector<2x8xf32>
    %70 = vector.multi_reduction <add>, %69, %cst_26 [2] : vector<2x8x8xf32> to vector<2x8xf32>
    %71 = vector.shape_cast %70 : vector<2x8xf32> to vector<2x8x1xf32>
    %72 = tpu.reciprocal %71 {approx = true} : vector<2x8x1xf32> -> vector<2x8x1xf32>
    %73 = vector.broadcast %72 : vector<2x8x1xf32> to vector<2x8x8xf32>
    %74 = arith.mulf %69, %73 : vector<2x8x8xf32>
    "tpu.trace_start"() <{level = 10 : i32, message = "bqk,bkd->bqd"}> : () -> ()
    %cst_27 = arith.constant dense<0.000000e+00> : vector<2x8x8xf32>
    %75 = tpu.matmul %74, %59, %cst_27 {dimension_numbers = #tpu.dot_dimension_numbers<[2], [1], [1], [2], [0, 0, 0, 1, 1, 2], [0], [0]>} : vector<2x8x8xf32>, vector<2x8x8xf32>, vector<2x8x8xf32> -> vector<2x8x8xf32>
    "tpu.trace_stop"() : () -> ()
    %76 = vector.extract_strided_slice %12 {offsets = [0, 0, 24], sizes = [2, 8, 8], strides = [1, 1, 1]} : vector<2x8x96xf32> to vector<2x8x8xf32>
    %77 = vector.extract_strided_slice %12 {offsets = [0, 0, 56], sizes = [2, 8, 8], strides = [1, 1, 1]} : vector<2x8x96xf32> to vector<2x8x8xf32>
    %78 = vector.extract_strided_slice %12 {offsets = [0, 0, 88], sizes = [2, 8, 8], strides = [1, 1, 1]} : vector<2x8x96xf32> to vector<2x8x8xf32>
    "tpu.trace_start"() <{level = 10 : i32, message = "bqd,bkd->bqk"}> : () -> ()
    %cst_28 = arith.constant dense<0.000000e+00> : vector<2x8x8xf32>
    %79 = tpu.matmul %76, %77, %cst_28 {dimension_numbers = #tpu.dot_dimension_numbers<[2], [2], [1], [1], [0, 0, 0, 1, 1, 1], [0], [0]>} : vector<2x8x8xf32>, vector<2x8x8xf32>, vector<2x8x8xf32> -> vector<2x8x8xf32>
    "tpu.trace_stop"() : () -> ()
    %cst_29 = arith.constant 0.353553385 : f32
    %80 = vector.broadcast %cst_29 : f32 to vector<2x8x8xf32>
    %81 = arith.mulf %79, %80 : vector<2x8x8xf32>
    %82 = vector.broadcast %18 : vector<2x1x8xf32> to vector<2x8x8xf32>
    %83 = arith.addf %81, %82 : vector<2x8x8xf32>
    %cst_30 = arith.constant dense<0xFF800000> : vector<2x8xf32>
    %84 = vector.multi_reduction <maximumf>, %83, %cst_30 [2] : vector<2x8x8xf32> to vector<2x8xf32>
    %85 = vector.shape_cast %84 : vector<2x8xf32> to vector<2x8x1xf32>
    %86 = vector.broadcast %85 : vector<2x8x1xf32> to vector<2x8x8xf32>
    %87 = arith.subf %83, %86 : vector<2x8x8xf32>
    %88 = math.exp %87 : vector<2x8x8xf32>
    %cst_31 = arith.constant dense<0.000000e+00> : vector<2x8xf32>
    %89 = vector.multi_reduction <add>, %88, %cst_31 [2] : vector<2x8x8xf32> to vector<2x8xf32>
    %90 = vector.shape_cast %89 : vector<2x8xf32> to vector<2x8x1xf32>
    %91 = tpu.reciprocal %90 {approx = true} : vector<2x8x1xf32> -> vector<2x8x1xf32>
    %92 = vector.broadcast %91 : vector<2x8x1xf32> to vector<2x8x8xf32>
    %93 = arith.mulf %88, %92 : vector<2x8x8xf32>
    "tpu.trace_start"() <{level = 10 : i32, message = "bqk,bkd->bqd"}> : () -> ()
    %cst_32 = arith.constant dense<0.000000e+00> : vector<2x8x8xf32>
    %94 = tpu.matmul %93, %78, %cst_32 {dimension_numbers = #tpu.dot_dimension_numbers<[2], [1], [1], [2], [0, 0, 0, 1, 1, 2], [0], [0]>} : vector<2x8x8xf32>, vector<2x8x8xf32>, vector<2x8x8xf32> -> vector<2x8x8xf32>
    "tpu.trace_stop"() : () -> ()
    %95 = tpu.concatenate %37, %56, %75, %94 in 2 : vector<2x8x8xf32>, vector<2x8x8xf32>, vector<2x8x8xf32>, vector<2x8x8xf32> -> vector<2x8x32xf32>
    %96 = vector.shape_cast %95 : vector<2x8x32xf32> to vector<16x32xf32>
    %c0_33 = arith.constant 0 : index
    %c0_34 = arith.constant 0 : index
    %c0_35 = arith.constant 0 : index
    %97 = vector.load %arg5[%c0_33, %c0_34, %c0_35] : memref<1x32x32xf32, #tpu.memory_space<vmem>>, vector<1x32x32xf32>
    %98 = vector.shape_cast %97 : vector<1x32x32xf32> to vector<32x32xf32>
    %cst_36 = arith.constant dense<0.000000e+00> : vector<16x32xf32>
    %99 = tpu.matmul %96, %98, %cst_36 {dimension_numbers = #tpu.dot_dimension_numbers<[1], [0], [0], [1], [0, 0, 1, 1], [], []>} : vector<16x32xf32>, vector<32x32xf32>, vector<16x32xf32> -> vector<16x32xf32>
    %c0_37 = arith.constant 0 : index
    %c0_38 = arith.constant 0 : index
    %c0_39 = arith.constant 0 : index
    %100 = vector.load %arg6[%c0_37, %c0_38, %c0_39] : memref<1x1x32xf32, #tpu.memory_space<vmem>>, vector<1x1x32xf32>
    %101 = vector.shape_cast %100 : vector<1x1x32xf32> to vector<1x32xf32>
    %102 = vector.broadcast %101 : vector<1x32xf32> to vector<16x32xf32>
    %103 = arith.addf %99, %102 : vector<16x32xf32>
    %104 = vector.shape_cast %103 : vector<16x32xf32> to vector<2x8x32xf32>
    %105 = arith.addf %3, %104 : vector<2x8x32xf32>
    %c0_40 = arith.constant 0 : index
    %c0_41 = arith.constant 0 : index
    %c0_42 = arith.constant 0 : index
    %106 = vector.load %arg7[%c0_40, %c0_41, %c0_42] : memref<1x1x32xf32, #tpu.memory_space<vmem>>, vector<1x1x32xf32>
    %107 = vector.shape_cast %106 : vector<1x1x32xf32> to vector<1x32xf32>
    %c0_43 = arith.constant 0 : index
    %c0_44 = arith.constant 0 : index
    %c0_45 = arith.constant 0 : index
    %108 = vector.load %arg8[%c0_43, %c0_44, %c0_45] : memref<1x1x32xf32, #tpu.memory_space<vmem>>, vector<1x1x32xf32>
    %109 = vector.shape_cast %108 : vector<1x1x32xf32> to vector<1x32xf32>
    %cst_46 = arith.constant dense<0.000000e+00> : vector<2x8xf32>
    %110 = vector.multi_reduction <add>, %105, %cst_46 [2] : vector<2x8x32xf32> to vector<2x8xf32>
    %111 = vector.shape_cast %110 : vector<2x8xf32> to vector<2x8x1xf32>
    %cst_47 = arith.constant 3.200000e+01 : f32
    %112 = vector.broadcast %cst_47 : f32 to vector<2x8x1xf32>
    %113 = arith.divf %111, %112 : vector<2x8x1xf32>
    %114 = vector.broadcast %113 : vector<2x8x1xf32> to vector<2x8x32xf32>
    %115 = arith.subf %105, %114 : vector<2x8x32xf32>
    %116 = arith.mulf %115, %115 : vector<2x8x32xf32>
    %cst_48 = arith.constant dense<0.000000e+00> : vector<2x8xf32>
    %117 = vector.multi_reduction <add>, %116, %cst_48 [2] : vector<2x8x32xf32> to vector<2x8xf32>
    %118 = vector.shape_cast %117 : vector<2x8xf32> to vector<2x8x1xf32>
    %cst_49 = arith.constant 3.200000e+01 : f32
    %119 = vector.broadcast %cst_49 : f32 to vector<2x8x1xf32>
    %120 = arith.divf %118, %119 : vector<2x8x1xf32>
    %121 = vector.broadcast %113 : vector<2x8x1xf32> to vector<2x8x32xf32>
    %122 = arith.subf %105, %121 : vector<2x8x32xf32>
    %cst_50 = arith.constant 9.99999996E-13 : f32
    %123 = vector.broadcast %cst_50 : f32 to vector<2x8x1xf32>
    %124 = arith.addf %120, %123 : vector<2x8x1xf32>
    %125 = math.rsqrt %124 : vector<2x8x1xf32>
    %126 = vector.broadcast %125 : vector<2x8x1xf32> to vector<2x8x32xf32>
    %127 = arith.mulf %122, %126 : vector<2x8x32xf32>
    %128 = vector.shape_cast %107 : vector<1x32xf32> to vector<1x1x32xf32>
    %129 = vector.broadcast %128 : vector<1x1x32xf32> to vector<2x8x32xf32>
    %130 = arith.mulf %127, %129 : vector<2x8x32xf32>
    %131 = vector.shape_cast %109 : vector<1x32xf32> to vector<1x1x32xf32>
    %132 = vector.broadcast %131 : vector<1x1x32xf32> to vector<2x8x32xf32>
    %133 = arith.addf %130, %132 : vector<2x8x32xf32>
    %134 = vector.shape_cast %133 : vector<2x8x32xf32> to vector<16x32xf32>
    %c0_51 = arith.constant 0 : index
    %c0_52 = arith.constant 0 : index
    %c0_53 = arith.constant 0 : index
    %135 = vector.load %arg9[%c0_51, %c0_52, %c0_53] : memref<1x32x64xf32, #tpu.memory_space<vmem>>, vector<1x32x64xf32>
    %136 = vector.shape_cast %135 : vector<1x32x64xf32> to vector<32x64xf32>
    %cst_54 = arith.constant dense<0.000000e+00> : vector<16x64xf32>
    %137 = tpu.matmul %134, %136, %cst_54 {dimension_numbers = #tpu.dot_dimension_numbers<[1], [0], [0], [1], [0, 0, 1, 1], [], []>} : vector<16x32xf32>, vector<32x64xf32>, vector<16x64xf32> -> vector<16x64xf32>
    %c0_55 = arith.constant 0 : index
    %c0_56 = arith.constant 0 : index
    %c0_57 = arith.constant 0 : index
    %138 = vector.load %arg10[%c0_55, %c0_56, %c0_57] : memref<1x1x64xf32, #tpu.memory_space<vmem>>, vector<1x1x64xf32>
    %139 = vector.shape_cast %138 : vector<1x1x64xf32> to vector<1x64xf32>
    %140 = vector.broadcast %139 : vector<1x64xf32> to vector<16x64xf32>
    %141 = arith.addf %137, %140 : vector<16x64xf32>
    %142 = arith.mulf %141, %141 : vector<16x64xf32>
    %143 = arith.mulf %141, %142 : vector<16x64xf32>
    %cst_58 = arith.constant 4.471500e-02 : f32
    %144 = vector.broadcast %cst_58 : f32 to vector<16x64xf32>
    %145 = arith.mulf %144, %143 : vector<16x64xf32>
    %146 = arith.addf %141, %145 : vector<16x64xf32>
    %cst_59 = arith.constant 0.797884583 : f32
    %147 = vector.broadcast %cst_59 : f32 to vector<16x64xf32>
    %148 = arith.mulf %147, %146 : vector<16x64xf32>
    %149 = math.tanh %148 : vector<16x64xf32>
    %cst_60 = arith.constant 1.000000e+00 : f32
    %150 = vector.broadcast %cst_60 : f32 to vector<16x64xf32>
    %151 = arith.addf %150, %149 : vector<16x64xf32>
    %cst_61 = arith.constant 5.000000e-01 : f32
    %152 = vector.broadcast %cst_61 : f32 to vector<16x64xf32>
    %153 = arith.mulf %152, %151 : vector<16x64xf32>
    %154 = arith.mulf %141, %153 : vector<16x64xf32>
    %c0_62 = arith.constant 0 : index
    %c0_63 = arith.constant 0 : index
    %c0_64 = arith.constant 0 : index
    %155 = vector.load %arg11[%c0_62, %c0_63, %c0_64] : memref<1x64x32xf32, #tpu.memory_space<vmem>>, vector<1x64x32xf32>
    %156 = vector.shape_cast %155 : vector<1x64x32xf32> to vector<64x32xf32>
    %cst_65 = arith.constant dense<0.000000e+00> : vector<16x32xf32>
    %157 = tpu.matmul %154, %156, %cst_65 {dimension_numbers = #tpu.dot_dimension_numbers<[1], [0], [0], [1], [0, 0, 1, 1], [], []>} : vector<16x64xf32>, vector<64x32xf32>, vector<16x32xf32> -> vector<16x32xf32>
    %c0_66 = arith.constant 0 : index
    %c0_67 = arith.constant 0 : index
    %c0_68 = arith.constant 0 : index
    %158 = vector.load %arg12[%c0_66, %c0_67, %c0_68] : memref<1x1x32xf32, #tpu.memory_space<vmem>>, vector<1x1x32xf32>
    %159 = vector.shape_cast %158 : vector<1x1x32xf32> to vector<1x32xf32>
    %160 = vector.broadcast %159 : vector<1x32xf32> to vector<16x32xf32>
    %161 = arith.addf %157, %160 : vector<16x32xf32>
    %162 = vector.shape_cast %161 : vector<16x32xf32> to vector<2x8x32xf32>
    %163 = arith.addf %133, %162 : vector<2x8x32xf32>
    %c0_69 = arith.constant 0 : index
    %c0_70 = arith.constant 0 : index
    %c0_71 = arith.constant 0 : index
    %164 = vector.load %arg13[%c0_69, %c0_70, %c0_71] : memref<1x1x32xf32, #tpu.memory_space<vmem>>, vector<1x1x32xf32>
    %165 = vector.shape_cast %164 : vector<1x1x32xf32> to vector<1x32xf32>
    %c0_72 = arith.constant 0 : index
    %c0_73 = arith.constant 0 : index
    %c0_74 = arith.constant 0 : index
    %166 = vector.load %arg14[%c0_72, %c0_73, %c0_74] : memref<1x1x32xf32, #tpu.memory_space<vmem>>, vector<1x1x32xf32>
    %167 = vector.shape_cast %166 : vector<1x1x32xf32> to vector<1x32xf32>
    %cst_75 = arith.constant dense<0.000000e+00> : vector<2x8xf32>
    %168 = vector.multi_reduction <add>, %163, %cst_75 [2] : vector<2x8x32xf32> to vector<2x8xf32>
    %169 = vector.shape_cast %168 : vector<2x8xf32> to vector<2x8x1xf32>
    %cst_76 = arith.constant 3.200000e+01 : f32
    %170 = vector.broadcast %cst_76 : f32 to vector<2x8x1xf32>
    %171 = arith.divf %169, %170 : vector<2x8x1xf32>
    %172 = vector.broadcast %171 : vector<2x8x1xf32> to vector<2x8x32xf32>
    %173 = arith.subf %163, %172 : vector<2x8x32xf32>
    %174 = arith.mulf %173, %173 : vector<2x8x32xf32>
    %cst_77 = arith.constant dense<0.000000e+00> : vector<2x8xf32>
    %175 = vector.multi_reduction <add>, %174, %cst_77 [2] : vector<2x8x32xf32> to vector<2x8xf32>
    %176 = vector.shape_cast %175 : vector<2x8xf32> to vector<2x8x1xf32>
    %cst_78 = arith.constant 3.200000e+01 : f32
    %177 = vector.broadcast %cst_78 : f32 to vector<2x8x1xf32>
    %178 = arith.divf %176, %177 : vector<2x8x1xf32>
    %179 = vector.broadcast %171 : vector<2x8x1xf32> to vector<2x8x32xf32>
    %180 = arith.subf %163, %179 : vector<2x8x32xf32>
    %cst_79 = arith.constant 9.99999996E-13 : f32
    %181 = vector.broadcast %cst_79 : f32 to vector<2x8x1xf32>
    %182 = arith.addf %178, %181 : vector<2x8x1xf32>
    %183 = math.rsqrt %182 : vector<2x8x1xf32>
    %184 = vector.broadcast %183 : vector<2x8x1xf32> to vector<2x8x32xf32>
    %185 = arith.mulf %180, %184 : vector<2x8x32xf32>
    %186 = vector.shape_cast %165 : vector<1x32xf32> to vector<1x1x32xf32>
    %187 = vector.broadcast %186 : vector<1x1x32xf32> to vector<2x8x32xf32>
    %188 = arith.mulf %185, %187 : vector<2x8x32xf32>
    %189 = vector.shape_cast %167 : vector<1x32xf32> to vector<1x1x32xf32>
    %190 = vector.broadcast %189 : vector<1x1x32xf32> to vector<2x8x32xf32>
    %191 = arith.addf %188, %190 : vector<2x8x32xf32>
    %c0_80 = arith.constant 0 : index
    %c0_81 = arith.constant 0 : index
    %c0_82 = arith.constant 0 : index
    %192 = vector.load %arg16[%c0_80, %c0_81, %c0_82] : memref<2x8x32xf32, #tpu.memory_space<vmem>>, vector<2x8x32xf32>
    tpu.vector_store %arg16[%c0_80, %c0_81, %c0_82], %191 {strides = array<i32>} : memref<2x8x32xf32, #tpu.memory_space<vmem>>, vector<2x8x32xf32>,
    %c1_i32 = arith.constant 1 : i32
    %193 = arith.cmpi eq, %arg0, %c1_i32 : i32
    %194 = arith.extui %193 : i1 to i32
    %c0_i32_83 = arith.constant 0 : i32
    %195 = arith.cmpi ne, %194, %c0_i32_83 : i32
    scf.if %195 {
      %cst_84 = arith.constant dense<0.000000e+00> : vector<2x32xf32>
      %196 = vector.multi_reduction <add>, %191, %cst_84 [1] : vector<2x8x32xf32> to vector<2x32xf32>
      %cst_85 = arith.constant 8.000000e+00 : f32
      %197 = vector.broadcast %cst_85 : f32 to vector<2x32xf32>
      %198 = arith.divf %196, %197 : vector<2x32xf32>
      %c0_86 = arith.constant 0 : index
      %c0_87 = arith.constant 0 : index
      %199 = vector.load %arg15[%c0_86, %c0_87] : memref<2x32xf32, #tpu.memory_space<vmem>>, vector<2x32xf32>
      tpu.vector_store %arg15[%c0_86, %c0_87], %198 {strides = array<i32>} : memref<2x32xf32, #tpu.memory_space<vmem>>, vector<2x32xf32>,
    } else {
    }
    return
  }
  func.func @transform_0(%arg0: i32) -> (i32, i32, i32) {
    %c0_i32 = arith.constant 0 : i32
    %c0_i32_0 = arith.constant 0 : i32
    %c0_i32_1 = arith.constant 0 : i32
    %c0_i32_2 = arith.constant 0 : i32
    return %c0_i32, %c0_i32_0, %c0_i32_1 : i32, i32, i32
  }
  func.func @transform_1(%arg0: i32) -> (i32, i32) {
    %c0_i32 = arith.constant 0 : i32
    %c0_i32_0 = arith.constant 0 : i32
    %c0_i32_1 = arith.constant 0 : i32
    return %c0_i32, %c0_i32_0 : i32, i32
  }
  func.func @transform_2(%arg0: i32) -> (i32, i32, i32) {
    %c0_i32 = arith.constant 0 : i32
    %c0_i32_0 = arith.constant 0 : i32
    %c0_i32_1 = arith.constant 0 : i32
    return %arg0, %c0_i32, %c0_i32_0 : i32, i32, i32
  }
  func.func @transform_3(%arg0: i32) -> (i32, i32, i32) {
    %c0_i32 = arith.constant 0 : i32
    %c0_i32_0 = arith.constant 0 : i32
    %c0_i32_1 = arith.constant 0 : i32
    return %arg0, %c0_i32, %c0_i32_0 : i32, i32, i32
  }
  func.func @transform_4(%arg0: i32) -> (i32, i32, i32) {
    %c0_i32 = arith.constant 0 : i32
    %c0_i32_0 = arith.constant 0 : i32
    %c0_i32_1 = arith.constant 0 : i32
    return %arg0, %c0_i32, %c0_i32_0 : i32, i32, i32
  }
  func.func @transform_5(%arg0: i32) -> (i32, i32, i32) {
    %c0_i32 = arith.constant 0 : i32
    %c0_i32_0 = arith.constant 0 : i32
    %c0_i32_1 = arith.constant 0 : i32
    return %arg0, %c0_i32, %c0_i32_0 : i32, i32, i32
  }
  func.func @transform_6(%arg0: i32) -> (i32, i32, i32) {
    %c0_i32 = arith.constant 0 : i32
    %c0_i32_0 = arith.constant 0 : i32
    %c0_i32_1 = arith.constant 0 : i32
    return %arg0, %c0_i32, %c0_i32_0 : i32, i32, i32
  }
  func.func @transform_7(%arg0: i32) -> (i32, i32, i32) {
    %c0_i32 = arith.constant 0 : i32
    %c0_i32_0 = arith.constant 0 : i32
    %c0_i32_1 = arith.constant 0 : i32
    return %arg0, %c0_i32, %c0_i32_0 : i32, i32, i32
  }
  func.func @transform_8(%arg0: i32) -> (i32, i32, i32) {
    %c0_i32 = arith.constant 0 : i32
    %c0_i32_0 = arith.constant 0 : i32
    %c0_i32_1 = arith.constant 0 : i32
    return %arg0, %c0_i32, %c0_i32_0 : i32, i32, i32
  }
  func.func @transform_9(%arg0: i32) -> (i32, i32, i32) {
    %c0_i32 = arith.constant 0 : i32
    %c0_i32_0 = arith.constant 0 : i32
    %c0_i32_1 = arith.constant 0 : i32
    return %arg0, %c0_i32, %c0_i32_0 : i32, i32, i32
  }
  func.func @transform_10(%arg0: i32) -> (i32, i32, i32) {
    %c0_i32 = arith.constant 0 : i32
    %c0_i32_0 = arith.constant 0 : i32
    %c0_i32_1 = arith.constant 0 : i32
    return %arg0, %c0_i32, %c0_i32_0 : i32, i32, i32
  }
  func.func @transform_11(%arg0: i32) -> (i32, i32, i32) {
    %c0_i32 = arith.constant 0 : i32
    %c0_i32_0 = arith.constant 0 : i32
    %c0_i32_1 = arith.constant 0 : i32
    return %arg0, %c0_i32, %c0_i32_0 : i32, i32, i32
  }
  func.func @transform_12(%arg0: i32) -> (i32, i32, i32) {
    %c0_i32 = arith.constant 0 : i32
    %c0_i32_0 = arith.constant 0 : i32
    %c0_i32_1 = arith.constant 0 : i32
    return %arg0, %c0_i32, %c0_i32_0 : i32, i32, i32
  }
  func.func @transform_13(%arg0: i32) -> (i32, i32, i32) {
    %c0_i32 = arith.constant 0 : i32
    %c0_i32_0 = arith.constant 0 : i32
    %c0_i32_1 = arith.constant 0 : i32
    return %arg0, %c0_i32, %c0_i32_0 : i32, i32, i32
  }
  func.func @transform_14(%arg0: i32) -> (i32, i32) {
    %c0_i32 = arith.constant 0 : i32
    %c0_i32_0 = arith.constant 0 : i32
    %c0_i32_1 = arith.constant 0 : i32
    return %c0_i32, %c0_i32_0 : i32, i32
  }
}

</mosaic_0001>

<llo_original>
// kernel: bert_forward.1
$region0: #{bert_forward.1}
  #allocation0 [shape = 'u32[]', space=smem, size = 0x4, offset = 0x4, fixed_abs, tag = 'smem constant byte address 0x4 - core index']
  #allocation1 [shape = 'u32[72,128]{1,0:T(1,128)}', space=vmem, size = 0x9000, scoped, tag = 'internal scratch']
  #allocation2 [shape = 'f32[2,8,32]{2,1,0:T(8,128)}', space=vmem, size = 0x2000, scoped, tag = 'scratch operand']
  %s0 = inlined_call_operand.vmem [shape: f32[2,8,32], index: 0, kind: input, shape index: {}]
  %s1 = inlined_call_operand.vmem [shape: f32[2,8], index: 1, kind: input, shape index: {}]
  %s2 = inlined_call_operand.vmem [shape: f32[2,32,96], index: 2, kind: input, shape index: {}]
  %s3 = inlined_call_operand.vmem [shape: f32[2,1,96], index: 3, kind: input, shape index: {}]
  %s4 = inlined_call_operand.vmem [shape: f32[2,32,32], index: 4, kind: input, shape index: {}]
  %s5 = inlined_call_operand.vmem [shape: f32[2,1,32], index: 5, kind: input, shape index: {}]
  %s6 = inlined_call_operand.vmem [shape: f32[2,1,32], index: 6, kind: input, shape index: {}]
  %s7 = inlined_call_operand.vmem [shape: f32[2,1,32], index: 7, kind: input, shape index: {}]
  %s8 = inlined_call_operand.vmem [shape: f32[2,32,64], index: 8, kind: input, shape index: {}]
  %s9 = inlined_call_operand.vmem [shape: f32[2,1,64], index: 9, kind: input, shape index: {}]
  %s10 = inlined_call_operand.vmem [shape: f32[2,64,32], index: 10, kind: input, shape index: {}]
  %s11 = inlined_call_operand.vmem [shape: f32[2,1,32], index: 11, kind: input, shape index: {}]
  %s12 = inlined_call_operand.vmem [shape: f32[2,1,32], index: 12, kind: input, shape index: {}]
  %s13 = inlined_call_operand.vmem [shape: f32[2,1,32], index: 13, kind: input, shape index: {}]
  %s14 = inlined_call_operand.hbm [shape: f32[2,32], index: 14, kind: output, shape index: {}]
  %s15 = sld [smem:[#allocation0]]
  $region97: #{bert_forward.1} parent=0
    _
  %s17 = ssub.s32 1, %s15
  %s18 = scalar_select 0, %s17, %s15
  $region1: #{bert_forward.1} parent=0
    #allocation3 [shape = 'u8[1024]{0}', space=vmem, size = 0x400, scoped, tag = 'output window, operand 0, single buffered']
    #allocation4 [shape = 's32[2]{0}', space=sflag, size = 0x8, scoped, tag = 'scoped memory for bert_forward.1']
    %19 = vsyncpa [#allocation4], 0
    loop: start=0, step=1, limit=4
    $region2: #{bert_forward.1} parent=1 // loop_pre_header
      _
    $region3: #{bert_forward.1} parent=1 // loop_header
      %s21 = sphi 0, %s25
      %p22 = scmp.ge.s32.totalorder %s21, 4
      %s29 = sphi 0, %s29
      %s31 = sphi 0, %s29
      %s32 = sphi 0, %s31
      %s46 = sphi 0, %s32
      %s50 = sphi 0, %s50
      %s52 = sphi 0, %s50
      %s53 = sphi 0, %s52
      %s67 = sphi 0, %s53
      %s73 = sphi 0, %s75
      %s76 = sphi 0, %s73
      %s77 = sphi 0, %s76
      %s93 = sphi 0, %s77
      %s99 = sphi 0, %s101
      %s102 = sphi 0, %s99
      %s103 = sphi 0, %s102
      %s119 = sphi 0, %s103
      %s125 = sphi 0, %s127
      %s128 = sphi 0, %s125
      %s129 = sphi 0, %s128
      %s145 = sphi 0, %s129
      %s151 = sphi 0, %s153
      %s154 = sphi 0, %s151
      %s155 = sphi 0, %s154
      %s171 = sphi 0, %s155
      %s177 = sphi 0, %s179
      %s180 = sphi 0, %s177
      %s181 = sphi 0, %s180
      %s197 = sphi 0, %s181
      %s203 = sphi 0, %s205
      %s206 = sphi 0, %s203
      %s207 = sphi 0, %s206
      %s223 = sphi 0, %s207
      %s229 = sphi 0, %s231
      %s232 = sphi 0, %s229
      %s233 = sphi 0, %s232
      %s249 = sphi 0, %s233
      %s255 = sphi 0, %s257
      %s258 = sphi 0, %s255
      %s259 = sphi 0, %s258
      %s275 = sphi 0, %s259
      %s281 = sphi 0, %s283
      %s284 = sphi 0, %s281
      %s285 = sphi 0, %s284
      %s301 = sphi 0, %s285
      %s307 = sphi 0, %s309
      %s310 = sphi 0, %s307
      %s311 = sphi 0, %s310
      %s327 = sphi 0, %s311
      %s333 = sphi 0, %s335
      %s336 = sphi 0, %s333
      %s337 = sphi 0, %s336
      %s353 = sphi 0, %s337
      %s359 = sphi 0, %s361
      %s362 = sphi 0, %s359
      %s363 = sphi 0, %s362
      %s379 = sphi 0, %s363
      %s383 = sphi 0, %s383
      %s385 = sphi 0, %s383
      %s386 = sphi 0, %s385
      %s400 = sphi 0, %s386
    $region4: #{bert_forward.1} parent=1 // loop_header_branch
      %24 = sbr.rel (%p22) target = $region8
    $region5: #{bert_forward.1} parent=1 // loop_body
      %s26 = ssub.s32 %s21, 1
      %s27 = ssub.s32 %s21, 2
      %s28 = sadd.s32 %s21, 1
      %s30 = sadd.s32 %s29, 1
      %p33 = scmp.eq.s32.totalorder %s21, 1
      %p34 = scmp.ne.s32.totalorder %s29, %s31
      %p35 = scmp.eq.s32.totalorder %s21, 0
      %p36 = por %p34, %p35
      %p37 = scmp.ne.s32.totalorder %s29, %s31
      %p38 = scmp.eq.s32.totalorder %s26, 1
      %p39 = por %p37, %p38
      %p40 = scmp.ne.s32.totalorder %s31, %s32
      %p41 = scmp.eq.s32.totalorder %s26, 0
      %p42 = por %p40, %p41
      %p43 = scmp.ne.s32.totalorder %s31, %s32
      %p44 = scmp.eq.s32.totalorder %s27, 1
      %p45 = por %p43, %p44
      %p47 = scmp.ne.s32.totalorder %s32, %s46
      %p48 = scmp.eq.s32.totalorder %s27, 0
      %p49 = por %p47, %p48
      %s51 = sadd.s32 %s50, 1
      %p54 = scmp.eq.s32.totalorder %s21, 1
      %p55 = scmp.ne.s32.totalorder %s50, %s52
      %p56 = scmp.eq.s32.totalorder %s21, 0
      %p57 = por %p55, %p56
      %p58 = scmp.ne.s32.totalorder %s50, %s52
      %p59 = scmp.eq.s32.totalorder %s26, 1
      %p60 = por %p58, %p59
      %p61 = scmp.ne.s32.totalorder %s52, %s53
      %p62 = scmp.eq.s32.totalorder %s26, 0
      %p63 = por %p61, %p62
      %p64 = scmp.ne.s32.totalorder %s52, %s53
      %p65 = scmp.eq.s32.totalorder %s27, 1
      %p66 = por %p64, %p65
      %p68 = scmp.ne.s32.totalorder %s53, %s67
      %p69 = scmp.eq.s32.totalorder %s27, 0
      %p70 = por %p68, %p69
      %s71 = ssub.s32 %s21, %s28
      %p72 = scmp.eq.s32.totalorder %s71, 0
      %s74 = sadd.s32 %s73, 1
      %s75 = scalar_select %p72, %s73, %s74
      %p78 = pneg %p72
      %p79 = scmp.eq.s32.totalorder %s21, 1
      %p80 = por %p78, %p79
      %p81 = scmp.ne.s32.totalorder %s73, %s76
      %p82 = scmp.eq.s32.totalorder %s21, 0
      %p83 = por %p81, %p82
      %p84 = scmp.ne.s32.totalorder %s73, %s76
      %p85 = scmp.eq.s32.totalorder %s26, 1
      %p86 = por %p84, %p85
      %p87 = scmp.ne.s32.totalorder %s76, %s77
      %p88 = scmp.eq.s32.totalorder %s26, 0
      %p89 = por %p87, %p88
      %p90 = scmp.ne.s32.totalorder %s76, %s77
      %p91 = scmp.eq.s32.totalorder %s27, 1
      %p92 = por %p90, %p91
      %p94 = scmp.ne.s32.totalorder %s77, %s93
      %p95 = scmp.eq.s32.totalorder %s27, 0
      %p96 = por %p94, %p95
      %s97 = ssub.s32 %s21, %s28
      %p98 = scmp.eq.s32.totalorder %s97, 0
      %s100 = sadd.s32 %s99, 1
      %s101 = scalar_select %p98, %s99, %s100
      %p104 = pneg %p98
      %p105 = scmp.eq.s32.totalorder %s21, 1
      %p106 = por %p104, %p105
      %p107 = scmp.ne.s32.totalorder %s99, %s102
      %p108 = scmp.eq.s32.totalorder %s21, 0
      %p109 = por %p107, %p108
      %p110 = scmp.ne.s32.totalorder %s99, %s102
      %p111 = scmp.eq.s32.totalorder %s26, 1
      %p112 = por %p110, %p111
      %p113 = scmp.ne.s32.totalorder %s102, %s103
      %p114 = scmp.eq.s32.totalorder %s26, 0
      %p115 = por %p113, %p114
      %p116 = scmp.ne.s32.totalorder %s102, %s103
      %p117 = scmp.eq.s32.totalorder %s27, 1
      %p118 = por %p116, %p117
      %p120 = scmp.ne.s32.totalorder %s103, %s119
      %p121 = scmp.eq.s32.totalorder %s27, 0
      %p122 = por %p120, %p121
      %s123 = ssub.s32 %s21, %s28
      %p124 = scmp.eq.s32.totalorder %s123, 0
      %s126 = sadd.s32 %s125, 1
      %s127 = scalar_select %p124, %s125, %s126
      %p130 = pneg %p124
      %p131 = scmp.eq.s32.totalorder %s21, 1
      %p132 = por %p130, %p131
      %p133 = scmp.ne.s32.totalorder %s125, %s128
      %p134 = scmp.eq.s32.totalorder %s21, 0
      %p135 = por %p133, %p134
      %p136 = scmp.ne.s32.totalorder %s125, %s128
      %p137 = scmp.eq.s32.totalorder %s26, 1
      %p138 = por %p136, %p137
      %p139 = scmp.ne.s32.totalorder %s128, %s129
      %p140 = scmp.eq.s32.totalorder %s26, 0
      %p141 = por %p139, %p140
      %p142 = scmp.ne.s32.totalorder %s128, %s129
      %p143 = scmp.eq.s32.totalorder %s27, 1
      %p144 = por %p142, %p143
      %p146 = scmp.ne.s32.totalorder %s129, %s145
      %p147 = scmp.eq.s32.totalorder %s27, 0
      %p148 = por %p146, %p147
      %s149 = ssub.s32 %s21, %s28
      %p150 = scmp.eq.s32.totalorder %s149, 0
      %s152 = sadd.s32 %s151, 1
      %s153 = scalar_select %p150, %s151, %s152
      %p156 = pneg %p150
      %p157 = scmp.eq.s32.totalorder %s21, 1
      %p158 = por %p156, %p157
      %p159 = scmp.ne.s32.totalorder %s151, %s154
      %p160 = scmp.eq.s32.totalorder %s21, 0
      %p161 = por %p159, %p160
      %p162 = scmp.ne.s32.totalorder %s151, %s154
      %p163 = scmp.eq.s32.totalorder %s26, 1
      %p164 = por %p162, %p163
      %p165 = scmp.ne.s32.totalorder %s154, %s155
      %p166 = scmp.eq.s32.totalorder %s26, 0
      %p167 = por %p165, %p166
      %p168 = scmp.ne.s32.totalorder %s154, %s155
      %p169 = scmp.eq.s32.totalorder %s27, 1
      %p170 = por %p168, %p169
      %p172 = scmp.ne.s32.totalorder %s155, %s171
      %p173 = scmp.eq.s32.totalorder %s27, 0
      %p174 = por %p172, %p173
      %s175 = ssub.s32 %s21, %s28
      %p176 = scmp.eq.s32.totalorder %s175, 0
      %s178 = sadd.s32 %s177, 1
      %s179 = scalar_select %p176, %s177, %s178
      %p182 = pneg %p176
      %p183 = scmp.eq.s32.totalorder %s21, 1
      %p184 = por %p182, %p183
      %p185 = scmp.ne.s32.totalorder %s177, %s180
      %p186 = scmp.eq.s32.totalorder %s21, 0
      %p187 = por %p185, %p186
      %p188 = scmp.ne.s32.totalorder %s177, %s180
      %p189 = scmp.eq.s32.totalorder %s26, 1
      %p190 = por %p188, %p189
      %p191 = scmp.ne.s32.totalorder %s180, %s181
      %p192 = scmp.eq.s32.totalorder %s26, 0
      %p193 = por %p191, %p192
      %p194 = scmp.ne.s32.totalorder %s180, %s181
      %p195 = scmp.eq.s32.totalorder %s27, 1
      %p196 = por %p194, %p195
      %p198 = scmp.ne.s32.totalorder %s181, %s197
      %p199 = scmp.eq.s32.totalorder %s27, 0
      %p200 = por %p198, %p199
      %s201 = ssub.s32 %s21, %s28
      %p202 = scmp.eq.s32.totalorder %s201, 0
      %s204 = sadd.s32 %s203, 1
      %s205 = scalar_select %p202, %s203, %s204
      %p208 = pneg %p202
      %p209 = scmp.eq.s32.totalorder %s21, 1
      %p210 = por %p208, %p209
      %p211 = scmp.ne.s32.totalorder %s203, %s206
      %p212 = scmp.eq.s32.totalorder %s21, 0
      %p213 = por %p211, %p212
      %p214 = scmp.ne.s32.totalorder %s203, %s206
      %p215 = scmp.eq.s32.totalorder %s26, 1
      %p216 = por %p214, %p215
      %p217 = scmp.ne.s32.totalorder %s206, %s207
      %p218 = scmp.eq.s32.totalorder %s26, 0
      %p219 = por %p217, %p218
      %p220 = scmp.ne.s32.totalorder %s206, %s207
      %p221 = scmp.eq.s32.totalorder %s27, 1
      %p222 = por %p220, %p221
      %p224 = scmp.ne.s32.totalorder %s207, %s223
      %p225 = scmp.eq.s32.totalorder %s27, 0
      %p226 = por %p224, %p225
      %s227 = ssub.s32 %s21, %s28
      %p228 = scmp.eq.s32.totalorder %s227, 0
      %s230 = sadd.s32 %s229, 1
      %s231 = scalar_select %p228, %s229, %s230
      %p234 = pneg %p228
      %p235 = scmp.eq.s32.totalorder %s21, 1
      %p236 = por %p234, %p235
      %p237 = scmp.ne.s32.totalorder %s229, %s232
      %p238 = scmp.eq.s32.totalorder %s21, 0
      %p239 = por %p237, %p238
      %p240 = scmp.ne.s32.totalorder %s229, %s232
      %p241 = scmp.eq.s32.totalorder %s26, 1
      %p242 = por %p240, %p241
      %p243 = scmp.ne.s32.totalorder %s232, %s233
      %p244 = scmp.eq.s32.totalorder %s26, 0
      %p245 = por %p243, %p244
      %p246 = scmp.ne.s32.totalorder %s232, %s233
      %p247 = scmp.eq.s32.totalorder %s27, 1
      %p248 = por %p246, %p247
      %p250 = scmp.ne.s32.totalorder %s233, %s249
      %p251 = scmp.eq.s32.totalorder %s27, 0
      %p252 = por %p250, %p251
      %s253 = ssub.s32 %s21, %s28
      %p254 = scmp.eq.s32.totalorder %s253, 0
      %s256 = sadd.s32 %s255, 1
      %s257 = scalar_select %p254, %s255, %s256
      %p260 = pneg %p254
      %p261 = scmp.eq.s32.totalorder %s21, 1
      %p262 = por %p260, %p261
      %p263 = scmp.ne.s32.totalorder %s255, %s258
      %p264 = scmp.eq.s32.totalorder %s21, 0
      %p265 = por %p263, %p264
      %p266 = scmp.ne.s32.totalorder %s255, %s258
      %p267 = scmp.eq.s32.totalorder %s26, 1
      %p268 = por %p266, %p267
      %p269 = scmp.ne.s32.totalorder %s258, %s259
      %p270 = scmp.eq.s32.totalorder %s26, 0
      %p271 = por %p269, %p270
      %p272 = scmp.ne.s32.totalorder %s258, %s259
      %p273 = scmp.eq.s32.totalorder %s27, 1
      %p274 = por %p272, %p273
      %p276 = scmp.ne.s32.totalorder %s259, %s275
      %p277 = scmp.eq.s32.totalorder %s27, 0
      %p278 = por %p276, %p277
      %s279 = ssub.s32 %s21, %s28
      %p280 = scmp.eq.s32.totalorder %s279, 0
      %s282 = sadd.s32 %s281, 1
      %s283 = scalar_select %p280, %s281, %s282
      %p286 = pneg %p280
      %p287 = scmp.eq.s32.totalorder %s21, 1
      %p288 = por %p286, %p287
      %p289 = scmp.ne.s32.totalorder %s281, %s284
      %p290 = scmp.eq.s32.totalorder %s21, 0
      %p291 = por %p289, %p290
      %p292 = scmp.ne.s32.totalorder %s281, %s284
      %p293 = scmp.eq.s32.totalorder %s26, 1
      %p294 = por %p292, %p293
      %p295 = scmp.ne.s32.totalorder %s284, %s285
      %p296 = scmp.eq.s32.totalorder %s26, 0
      %p297 = por %p295, %p296
      %p298 = scmp.ne.s32.totalorder %s284, %s285
      %p299 = scmp.eq.s32.totalorder %s27, 1
      %p300 = por %p298, %p299
      %p302 = scmp.ne.s32.totalorder %s285, %s301
      %p303 = scmp.eq.s32.totalorder %s27, 0
      %p304 = por %p302, %p303
      %s305 = ssub.s32 %s21, %s28
      %p306 = scmp.eq.s32.totalorder %s305, 0
      %s308 = sadd.s32 %s307, 1
      %s309 = scalar_select %p306, %s307, %s308
      %p312 = pneg %p306
      %p313 = scmp.eq.s32.totalorder %s21, 1
      %p314 = por %p312, %p313
      %p315 = scmp.ne.s32.totalorder %s307, %s310
      %p316 = scmp.eq.s32.totalorder %s21, 0
      %p317 = por %p315, %p316
      %p318 = scmp.ne.s32.totalorder %s307, %s310
      %p319 = scmp.eq.s32.totalorder %s26, 1
      %p320 = por %p318, %p319
      %p321 = scmp.ne.s32.totalorder %s310, %s311
      %p322 = scmp.eq.s32.totalorder %s26, 0
      %p323 = por %p321, %p322
      %p324 = scmp.ne.s32.totalorder %s310, %s311
      %p325 = scmp.eq.s32.totalorder %s27, 1
      %p326 = por %p324, %p325
      %p328 = scmp.ne.s32.totalorder %s311, %s327
      %p329 = scmp.eq.s32.totalorder %s27, 0
      %p330 = por %p328, %p329
      %s331 = ssub.s32 %s21, %s28
      %p332 = scmp.eq.s32.totalorder %s331, 0
      %s334 = sadd.s32 %s333, 1
      %s335 = scalar_select %p332, %s333, %s334
      %p338 = pneg %p332
      %p339 = scmp.eq.s32.totalorder %s21, 1
      %p340 = por %p338, %p339
      %p341 = scmp.ne.s32.totalorder %s333, %s336
      %p342 = scmp.eq.s32.totalorder %s21, 0
      %p343 = por %p341, %p342
      %p344 = scmp.ne.s32.totalorder %s333, %s336
      %p345 = scmp.eq.s32.totalorder %s26, 1
      %p346 = por %p344, %p345
      %p347 = scmp.ne.s32.totalorder %s336, %s337
      %p348 = scmp.eq.s32.totalorder %s26, 0
      %p349 = por %p347, %p348
      %p350 = scmp.ne.s32.totalorder %s336, %s337
      %p351 = scmp.eq.s32.totalorder %s27, 1
      %p352 = por %p350, %p351
      %p354 = scmp.ne.s32.totalorder %s337, %s353
      %p355 = scmp.eq.s32.totalorder %s27, 0
      %p356 = por %p354, %p355
      %s357 = ssub.s32 %s21, %s28
      %p358 = scmp.eq.s32.totalorder %s357, 0
      %s360 = sadd.s32 %s359, 1
      %s361 = scalar_select %p358, %s359, %s360
      %p364 = pneg %p358
      %p365 = scmp.eq.s32.totalorder %s21, 1
      %p366 = por %p364, %p365
      %p367 = scmp.ne.s32.totalorder %s359, %s362
      %p368 = scmp.eq.s32.totalorder %s21, 0
      %p369 = por %p367, %p368
      %p370 = scmp.ne.s32.totalorder %s359, %s362
      %p371 = scmp.eq.s32.totalorder %s26, 1
      %p372 = por %p370, %p371
      %p373 = scmp.ne.s32.totalorder %s362, %s363
      %p374 = scmp.eq.s32.totalorder %s26, 0
      %p375 = por %p373, %p374
      %p376 = scmp.ne.s32.totalorder %s362, %s363
      %p377 = scmp.eq.s32.totalorder %s27, 1
      %p378 = por %p376, %p377
      %p380 = scmp.ne.s32.totalorder %s363, %s379
      %p381 = scmp.eq.s32.totalorder %s27, 0
      %p382 = por %p380, %p381
      %s384 = sadd.s32 %s383, 1
      %p387 = scmp.eq.s32.totalorder %s21, 1
      %p388 = scmp.ne.s32.totalorder %s383, %s385
      %p389 = scmp.eq.s32.totalorder %s21, 0
      %p390 = por %p388, %p389
      %p391 = scmp.ne.s32.totalorder %s383, %s385
      %p392 = scmp.eq.s32.totalorder %s26, 1
      %p393 = por %p391, %p392
      %p394 = scmp.ne.s32.totalorder %s385, %s386
      %p395 = scmp.eq.s32.totalorder %s26, 0
      %p396 = por %p394, %p395
      %p397 = scmp.ne.s32.totalorder %s385, %s386
      %p398 = scmp.eq.s32.totalorder %s27, 1
      %p399 = por %p397, %p398
      %p401 = scmp.ne.s32.totalorder %s386, %s400
      %p402 = scmp.eq.s32.totalorder %s27, 0
      %p403 = por %p401, %p402
      %p404 = scmp.le.s32.totalorder 1, %s21
      %p405 = scmp.lt.s32.totalorder %s21, 3
      %p406 = pnand %p404, %p405
      %p407 = pneg %p406
      // Predicated region
      $region9: #{bert_forward.1} parent=5 // pred_check
        _
      $region10: #{bert_forward.1} parent=5 // pred_check_branch
        %409 = sbr.rel (%p406) target = $region12
      $region11: #{bert_forward.1} parent=5 // pred_region
        %s410 = ssub.s32 %s21, 1
        // Predicated region
        $region13: #{bert_forward.1} parent=11 // pred_check
          %p411 = pneg %p42
        $region14: #{bert_forward.1} parent=11 // pred_check_branch
          %413 = sbr.rel (%p411) target = $region16
        $region15: #{bert_forward.1} parent=11 // pred_region
          _
        $region16: #{bert_forward.1} parent=11 // pred_fallthru
          _
        // Predicated region
        $region17: #{bert_forward.1} parent=11 // pred_check
          %p414 = pneg %p63
        $region18: #{bert_forward.1} parent=11 // pred_check_branch
          %416 = sbr.rel (%p414) target = $region20
        $region19: #{bert_forward.1} parent=11 // pred_region
          _
        $region20: #{bert_forward.1} parent=11 // pred_fallthru
          _
      $region12: #{bert_forward.1} parent=5 // pred_fallthru
        _
      %p417 = scmp.lt.s32.totalorder %s21, 2
      // Predicated region
      $region21: #{bert_forward.1} parent=5 // pred_check
        %p418 = pneg %p417
      $region22: #{bert_forward.1} parent=5 // pred_check_branch
        %420 = sbr.rel (%p418) target = $region24
      $region23: #{bert_forward.1} parent=5 // pred_region
        // Predicated region
        $region25: #{bert_forward.1} parent=23 // pred_check
          %p421 = pneg %p83
        $region26: #{bert_forward.1} parent=23 // pred_check_branch
          %423 = sbr.rel (%p421) target = $region28
        $region27: #{bert_forward.1} parent=23 // pred_region
          %p424 = scmp.lt.s32.totalorder %s21, 1
          %s425 = scalar_select %p424, %s21, 1
          %s426 = smul.addr %s425, 4
          %s427 = smul.addr %s426, 8
          %s428 = scalar_lea.vmem %s2, %s427
        $region28: #{bert_forward.1} parent=23 // pred_fallthru
          _
        // Predicated region
        $region29: #{bert_forward.1} parent=23 // pred_check
          %p429 = pneg %p109
        $region30: #{bert_forward.1} parent=23 // pred_check_branch
          %431 = sbr.rel (%p429) target = $region32
        $region31: #{bert_forward.1} parent=23 // pred_region
          %p432 = scmp.lt.s32.totalorder %s21, 1
          %s433 = scalar_select %p432, %s21, 1
          %s434 = scalar_lea.vmem %s3, %s433
        $region32: #{bert_forward.1} parent=23 // pred_fallthru
          _
        // Predicated region
        $region33: #{bert_forward.1} parent=23 // pred_check
          %p435 = pneg %p135
        $region34: #{bert_forward.1} parent=23 // pred_check_branch
          %437 = sbr.rel (%p435) target = $region36
        $region35: #{bert_forward.1} parent=23 // pred_region
          %p438 = scmp.lt.s32.totalorder %s21, 1
          %s439 = scalar_select %p438, %s21, 1
          %s440 = smul.addr %s439, 4
          %s441 = smul.addr %s440, 8
          %s442 = scalar_lea.vmem %s4, %s441
        $region36: #{bert_forward.1} parent=23 // pred_fallthru
          _
        // Predicated region
        $region37: #{bert_forward.1} parent=23 // pred_check
          %p443 = pneg %p161
        $region38: #{bert_forward.1} parent=23 // pred_check_branch
          %445 = sbr.rel (%p443) target = $region40
        $region39: #{bert_forward.1} parent=23 // pred_region
          %p446 = scmp.lt.s32.totalorder %s21, 1
          %s447 = scalar_select %p446, %s21, 1
          %s448 = scalar_lea.vmem %s5, %s447
        $region40: #{bert_forward.1} parent=23 // pred_fallthru
          _
        // Predicated region
        $region41: #{bert_forward.1} parent=23 // pred_check
          %p449 = pneg %p187
        $region42: #{bert_forward.1} parent=23 // pred_check_branch
          %451 = sbr.rel (%p449) target = $region44
        $region43: #{bert_forward.1} parent=23 // pred_region
          %p452 = scmp.lt.s32.totalorder %s21, 1
          %s453 = scalar_select %p452, %s21, 1
          %s454 = scalar_lea.vmem %s6, %s453
        $region44: #{bert_forward.1} parent=23 // pred_fallthru
          _
        // Predicated region
        $region45: #{bert_forward.1} parent=23 // pred_check
          %p455 = pneg %p213
        $region46: #{bert_forward.1} parent=23 // pred_check_branch
          %457 = sbr.rel (%p455) target = $region48
        $region47: #{bert_forward.1} parent=23 // pred_region
          %p458 = scmp.lt.s32.totalorder %s21, 1
          %s459 = scalar_select %p458, %s21, 1
          %s460 = scalar_lea.vmem %s7, %s459
        $region48: #{bert_forward.1} parent=23 // pred_fallthru
          _
        // Predicated region
        $region49: #{bert_forward.1} parent=23 // pred_check
          %p461 = pneg %p239
        $region50: #{bert_forward.1} parent=23 // pred_check_branch
          %463 = sbr.rel (%p461) target = $region52
        $region51: #{bert_forward.1} parent=23 // pred_region
          %p464 = scmp.lt.s32.totalorder %s21, 1
          %s465 = scalar_select %p464, %s21, 1
          %s466 = smul.addr %s465, 4
          %s467 = smul.addr %s466, 8
          %s468 = scalar_lea.vmem %s8, %s467
        $region52: #{bert_forward.1} parent=23 // pred_fallthru
          _
        // Predicated region
        $region53: #{bert_forward.1} parent=23 // pred_check
          %p469 = pneg %p265
        $region54: #{bert_forward.1} parent=23 // pred_check_branch
          %471 = sbr.rel (%p469) target = $region56
        $region55: #{bert_forward.1} parent=23 // pred_region
          %p472 = scmp.lt.s32.totalorder %s21, 1
          %s473 = scalar_select %p472, %s21, 1
          %s474 = scalar_lea.vmem %s9, %s473
        $region56: #{bert_forward.1} parent=23 // pred_fallthru
          _
        // Predicated region
        $region57: #{bert_forward.1} parent=23 // pred_check
          %p475 = pneg %p291
        $region58: #{bert_forward.1} parent=23 // pred_check_branch
          %477 = sbr.rel (%p475) target = $region60
        $region59: #{bert_forward.1} parent=23 // pred_region
          %p478 = scmp.lt.s32.totalorder %s21, 1
          %s479 = scalar_select %p478, %s21, 1
          %s480 = smul.addr %s479, 8
          %s481 = smul.addr %s480, 8
          %s482 = scalar_lea.vmem %s10, %s481
        $region60: #{bert_forward.1} parent=23 // pred_fallthru
          _
        // Predicated region
        $region61: #{bert_forward.1} parent=23 // pred_check
          %p483 = pneg %p317
        $region62: #{bert_forward.1} parent=23 // pred_check_branch
          %485 = sbr.rel (%p483) target = $region64
        $region63: #{bert_forward.1} parent=23 // pred_region
          %p486 = scmp.lt.s32.totalorder %s21, 1
          %s487 = scalar_select %p486, %s21, 1
          %s488 = scalar_lea.vmem %s11, %s487
        $region64: #{bert_forward.1} parent=23 // pred_fallthru
          _
        // Predicated region
        $region65: #{bert_forward.1} parent=23 // pred_check
          %p489 = pneg %p343
        $region66: #{bert_forward.1} parent=23 // pred_check_branch
          %491 = sbr.rel (%p489) target = $region68
        $region67: #{bert_forward.1} parent=23 // pred_region
          %p492 = scmp.lt.s32.totalorder %s21, 1
          %s493 = scalar_select %p492, %s21, 1
          %s494 = scalar_lea.vmem %s12, %s493
        $region68: #{bert_forward.1} parent=23 // pred_fallthru
          _
        // Predicated region
        $region69: #{bert_forward.1} parent=23 // pred_check
          %p495 = pneg %p369
        $region70: #{bert_forward.1} parent=23 // pred_check_branch
          %497 = sbr.rel (%p495) target = $region72
        $region71: #{bert_forward.1} parent=23 // pred_region
          %p498 = scmp.lt.s32.totalorder %s21, 1
          %s499 = scalar_select %p498, %s21, 1
          %s500 = scalar_lea.vmem %s13, %s499
        $region72: #{bert_forward.1} parent=23 // pred_fallthru
          _
      $region24: #{bert_forward.1} parent=5 // pred_fallthru
        _
      %p501 = scmp.le.s32.totalorder 1, %s21
      %p502 = scmp.lt.s32.totalorder %s21, 3
      %p503 = pnand %p501, %p502
      %p504 = pneg %p503
      // Predicated region
      $region73: #{bert_forward.1} parent=5 // pred_check
        _
      $region74: #{bert_forward.1} parent=5 // pred_check_branch
        %506 = sbr.rel (%p503) target = $region76
      $region75: #{bert_forward.1} parent=5 // pred_region
        %s507 = ssub.s32 %s21, 1
        %p508 = pneg %p42
        %p509 = pneg %p39
        %p510 = pneg %p63
        %p511 = pneg %p60
        %p512 = scmp.lt.s32.totalorder %s26, 1
        %s513 = scalar_select %p512, %s26, 1
        %s514 = smul.addr %s513, 4
        %s515 = smul.addr %s514, 8
        %s516 = scalar_lea.vmem %s2, %s515
        %p517 = pneg %p89
        %p518 = pneg %p86
        %p519 = scmp.lt.s32.totalorder %s26, 1
        %s520 = scalar_select %p519, %s26, 1
        %s521 = scalar_lea.vmem %s3, %s520
        %p522 = pneg %p115
        %p523 = pneg %p112
        %p524 = scmp.lt.s32.totalorder %s26, 1
        %s525 = scalar_select %p524, %s26, 1
        %s526 = smul.addr %s525, 4
        %s527 = smul.addr %s526, 8
        %s528 = scalar_lea.vmem %s4, %s527
        %p529 = pneg %p141
        %p530 = pneg %p138
        %p531 = scmp.lt.s32.totalorder %s26, 1
        %s532 = scalar_select %p531, %s26, 1
        %s533 = scalar_lea.vmem %s5, %s532
        %p534 = pneg %p167
        %p535 = pneg %p164
        %p536 = scmp.lt.s32.totalorder %s26, 1
        %s537 = scalar_select %p536, %s26, 1
        %s538 = scalar_lea.vmem %s6, %s537
        %p539 = pneg %p193
        %p540 = pneg %p190
        %p541 = scmp.lt.s32.totalorder %s26, 1
        %s542 = scalar_select %p541, %s26, 1
        %s543 = scalar_lea.vmem %s7, %s542
        %p544 = pneg %p219
        %p545 = pneg %p216
        %p546 = scmp.lt.s32.totalorder %s26, 1
        %s547 = scalar_select %p546, %s26, 1
        %s548 = smul.addr %s547, 4
        %s549 = smul.addr %s548, 8
        %s550 = scalar_lea.vmem %s8, %s549
        %p551 = pneg %p245
        %p552 = pneg %p242
        %p553 = scmp.lt.s32.totalorder %s26, 1
        %s554 = scalar_select %p553, %s26, 1
        %s555 = scalar_lea.vmem %s9, %s554
        %p556 = pneg %p271
        %p557 = pneg %p268
        %p558 = scmp.lt.s32.totalorder %s26, 1
        %s559 = scalar_select %p558, %s26, 1
        %s560 = smul.addr %s559, 8
        %s561 = smul.addr %s560, 8
        %s562 = scalar_lea.vmem %s10, %s561
        %p563 = pneg %p297
        %p564 = pneg %p294
        %p565 = scmp.lt.s32.totalorder %s26, 1
        %s566 = scalar_select %p565, %s26, 1
        %s567 = scalar_lea.vmem %s11, %s566
        %p568 = pneg %p323
        %p569 = pneg %p320
        %p570 = scmp.lt.s32.totalorder %s26, 1
        %s571 = scalar_select %p570, %s26, 1
        %s572 = scalar_lea.vmem %s12, %s571
        %p573 = pneg %p349
        %p574 = pneg %p346
        %p575 = scmp.lt.s32.totalorder %s26, 1
        %s576 = scalar_select %p575, %s26, 1
        %s577 = scalar_lea.vmem %s13, %s576
        %p578 = pneg %p375
        %p579 = pneg %p372
        %p580 = pneg %p396
        %p581 = pneg %p393
        %p582 = scmp.lt.s32.totalorder %s26, 1
        %s583 = scalar_select %p582, %s26, 1
        %s584 = smul.addr %s583, 4
        %s585 = smul.addr %s584, 8
        %s586 = scalar_lea.vmem %s2, %s585
        %p587 = scmp.lt.s32.totalorder %s26, 1
        %s588 = scalar_select %p587, %s26, 1
        %s589 = scalar_lea.vmem %s3, %s588
        %p590 = scmp.lt.s32.totalorder %s26, 1
        %s591 = scalar_select %p590, %s26, 1
        %s592 = smul.addr %s591, 4
        %s593 = smul.addr %s592, 8
        %s594 = scalar_lea.vmem %s4, %s593
        %p595 = scmp.lt.s32.totalorder %s26, 1
        %s596 = scalar_select %p595, %s26, 1
        %s597 = scalar_lea.vmem %s5, %s596
        %p598 = scmp.lt.s32.totalorder %s26, 1
        %s599 = scalar_select %p598, %s26, 1
        %s600 = scalar_lea.vmem %s6, %s599
        %p601 = scmp.lt.s32.totalorder %s26, 1
        %s602 = scalar_select %p601, %s26, 1
        %s603 = scalar_lea.vmem %s7, %s602
        %p604 = scmp.lt.s32.totalorder %s26, 1
        %s605 = scalar_select %p604, %s26, 1
        %s606 = smul.addr %s605, 4
        %s607 = smul.addr %s606, 8
        %s608 = scalar_lea.vmem %s8, %s607
        %p609 = scmp.lt.s32.totalorder %s26, 1
        %s610 = scalar_select %p609, %s26, 1
        %s611 = scalar_lea.vmem %s9, %s610
        %p612 = scmp.lt.s32.totalorder %s26, 1
        %s613 = scalar_select %p612, %s26, 1
        %s614 = smul.addr %s613, 8
        %s615 = smul.addr %s614, 8
        %s616 = scalar_lea.vmem %s10, %s615
        %p617 = scmp.lt.s32.totalorder %s26, 1
        %s618 = scalar_select %p617, %s26, 1
        %s619 = scalar_lea.vmem %s11, %s618
        %p620 = scmp.lt.s32.totalorder %s26, 1
        %s621 = scalar_select %p620, %s26, 1
        %s622 = scalar_lea.vmem %s12, %s621
        %p623 = scmp.lt.s32.totalorder %s26, 1
        %s624 = scalar_select %p623, %s26, 1
        %s625 = scalar_lea.vmem %s13, %s624
        %p626 = scmp.eq.s32.totalorder %s26, 0
        // Predicated region
        $region77: #{bert_forward.1} parent=75 // pred_check
          %p627 = pneg %p626
        $region78: #{bert_forward.1} parent=75 // pred_check_branch
          %629 = sbr.rel (%p627) target = $region80
        $region79: #{bert_forward.1} parent=75 // pred_region
          %v630 = vld [vmem:[%s0] sm:$0xff]
          %v631 = vld [vmem:[%s0 + $0x8] sm:$0xff]
          %vm632 = vcmask 261120
          %633 = vst.msk [vmem:[#allocation2] sm:$0xff] %vm632, %v630
          %634 = vst.msk [vmem:[#allocation2 + $0x8] sm:$0xff] %vm632, %v631
        $region80: #{bert_forward.1} parent=75 // pred_fallthru
          _
        %v635 = vld [vmem:[#allocation2] sm:$0xff]
        %v636 = vld [vmem:[#allocation2 + $0x8] sm:$0xff]
        %v637 = vld [vmem:[%s586] sm:$0xff]
        %v638 = vld [vmem:[%s586 + $0x8] sm:$0xff]
        %v639 = vld [vmem:[%s586 + $0x10] sm:$0xff]
        %v640 = vld [vmem:[%s586 + $0x18] sm:$0xff]
        %v641 = vld [vmem:[%s589] sm:$0x1]
        %v643 = vperm.slane %v641, 0
        %vm645 = vcmask 261120
        %v647 = vsel %vm645, %v635, 0
        %v650 = vsel %vm645, %v636, 0
        %652 = vmatpush.msra.mxu0 0.0
        %653 = vmatpush.msra.mxu0 0.0
        %654 = vmatpush.msra.mxu0 0.0
        %655 = vmatpush.msra.mxu0 0.0
        %656 = vmatpush.msra.mxu0 0.0
        %657 = vmatpush.msra.mxu0 0.0
        %658 = vmatpush.msra.mxu0 0.0
        %659 = vmatpush.msra.mxu0 0.0
        %660 = vmatpush.msra.mxu0 0.0
        %661 = vmatpush.msra.mxu0 0.0
        %662 = vmatpush.msra.mxu0 0.0
        %663 = vmatpush.msra.mxu0 0.0
        %664 = vmatpush.msra.mxu0 %v640
        %665 = vmatpush.msra.mxu0 %v639
        %666 = vmatpush.msra.mxu0 %v638
        %667 = vmatpush.msra.mxu0 %v637
        %668 = vmatmul.f32.gmra.mxu0 %v647
        %v669 = vpop.f32.mrf.mxu0
        %v670 = vadd.f32 %v643, %v669
        %671 = vmatmul.f32.gmra.mxu0 %v650
        %v672 = vpop.f32.mrf.mxu0
        %v673 = vadd.f32 %v643, %v672
        %674 = vdwg.mxu0
        %v675 = vld [vmem:[%s1] sm:$0x3]
        %v676 = vsub.f32 1.0, %v675
        %v677 = vmul.f32 %v676, -10000.0
        %v679 = vrot.slane %v677, 1
        %681 = vrot.lane.b32.xlu0 %v670, 96
        %v682 = vpop.permute.xlu0 %681
        %vm683 = vcmask 64512
        %v684 = vsel %vm683, %v670, 0
        %v686 = vsel %vm683, %v682, 0
        %688 = vmatpush.xpose.msra.mxu0 0.0
        %689 = vmatpush.xpose.msra.mxu0 0.0
        %690 = vmatpush.xpose.msra.mxu0 0.0
        %691 = vmatpush.xpose.msra.mxu0 0.0
        %692 = vmatpush.xpose.msra.mxu0 0.0
        %693 = vmatpush.xpose.msra.mxu0 0.0
        %694 = vmatpush.xpose.msra.mxu0 0.0
        %695 = vmatpush.xpose.msra.mxu0 0.0
        %696 = vmatpush.xpose.msra.mxu0 0.0
        %697 = vmatpush.xpose.msra.mxu0 0.0
        %698 = vmatpush.xpose.msra.mxu0 0.0
        %699 = vmatpush.xpose.msra.mxu0 0.0
        %700 = vmatpush.xpose.msra.mxu0 0.0
        %701 = vmatpush.xpose.msra.mxu0 0.0
        %702 = vmatpush.xpose.msra.mxu0 0.0
        %703 = vmatpush.xpose.msra.mxu0 %v686
        %704 = vmatmul.f32.gmra.mxu0 %v684
        %v705 = vpop.f32.mrf.mxu0
        %v706 = vadd.f32 0.0, %v705
        %707 = vdwg.mxu0
        %709 = vrot.lane.b32.xlu0 %v673, 96
        %v710 = vpop.permute.xlu0 %709
        %v711 = vsel %vm683, %v673, 0
        %v713 = vsel %vm683, %v710, 0
        %715 = vmatpush.xpose.msra.mxu0 0.0
        %716 = vmatpush.xpose.msra.mxu0 0.0
        %717 = vmatpush.xpose.msra.mxu0 0.0
        %718 = vmatpush.xpose.msra.mxu0 0.0
        %719 = vmatpush.xpose.msra.mxu0 0.0
        %720 = vmatpush.xpose.msra.mxu0 0.0
        %721 = vmatpush.xpose.msra.mxu0 0.0
        %722 = vmatpush.xpose.msra.mxu0 0.0
        %723 = vmatpush.xpose.msra.mxu0 0.0
        %724 = vmatpush.xpose.msra.mxu0 0.0
        %725 = vmatpush.xpose.msra.mxu0 0.0
        %726 = vmatpush.xpose.msra.mxu0 0.0
        %727 = vmatpush.xpose.msra.mxu0 0.0
        %728 = vmatpush.xpose.msra.mxu0 0.0
        %729 = vmatpush.xpose.msra.mxu0 0.0
        %730 = vmatpush.xpose.msra.mxu0 %v713
        %731 = vmatmul.f32.gmra.mxu0 %v711
        %v732 = vpop.f32.mrf.mxu0
        %v733 = vadd.f32 0.0, %v732
        %734 = vdwg.mxu0
        %v735 = vmul.f32 %v706, 0.35355338
        %v736 = vmul.f32 %v733, 0.35355338
        %v737 = vperm.slane %v677, 0
        %v738 = vperm.slane %v679, 0
        %v741 = vadd.f32 %v735, %v737
        %v742 = vadd.f32 %v736, %v738
        %v743 = vsel %vm683, %v741, -inf
        %744 = vmax.xlane.f32.xlu0 %v743
        %v745 = vpop.xlane.xlu0 %744
        %v746 = vsel %vm683, %v742, -inf
        %747 = vmax.xlane.f32.xlu0 %v746
        %v748 = vpop.xlane.xlu0 %747
        %v749 = vsub.f32 %v741, %v745
        %v750 = vsub.f32 %v742, %v748
        %v751 = vmul.f32 %v749, 1.442695
        %v752 = vpow.pop %v751
        %v753 = vmul.f32 %v750, 1.442695
        %v754 = vpow.pop %v753
        %v755 = vsel %vm683, %v752, 0.0
        %756 = vadd.xlane.f32.xlu0 %v755
        %v757 = vpop.xlane.xlu0 %756
        %v758 = vsel %vm683, %v754, 0.0
        %759 = vadd.xlane.f32.xlu0 %v758
        %v760 = vpop.xlane.xlu0 %759
        %v761 = vrcp.pop %v757
        %v762 = vrcp.pop %v760
        %v763 = vmul.f32 %v752, %v761
        %v764 = vmul.f32 %v754, %v762
        %765 = vrot.lane.b32.xlu0 %v670, 64
        %v766 = vpop.permute.xlu0 %765
        %v769 = vsel %vm683, %v763, 0
        %771 = vmatpush.msra.mxu0 0.0
        %772 = vmatpush.msra.mxu0 0.0
        %773 = vmatpush.msra.mxu0 0.0
        %774 = vmatpush.msra.mxu0 0.0
        %775 = vmatpush.msra.mxu0 0.0
        %776 = vmatpush.msra.mxu0 0.0
        %777 = vmatpush.msra.mxu0 0.0
        %778 = vmatpush.msra.mxu0 0.0
        %779 = vmatpush.msra.mxu0 0.0
        %780 = vmatpush.msra.mxu0 0.0
        %781 = vmatpush.msra.mxu0 0.0
        %782 = vmatpush.msra.mxu0 0.0
        %783 = vmatpush.msra.mxu0 0.0
        %784 = vmatpush.msra.mxu0 0.0
        %785 = vmatpush.msra.mxu0 0.0
        %786 = vmatpush.msra.mxu0 %v766
        %787 = vmatmul.f32.gmra.mxu0 %v769
        %v788 = vpop.f32.mrf.mxu0
        %v789 = vadd.f32 0.0, %v788
        %790 = vdwg.mxu0
        %791 = vrot.lane.b32.xlu0 %v673, 64
        %v792 = vpop.permute.xlu0 %791
        %v795 = vsel %vm683, %v764, 0
        %797 = vmatpush.msra.mxu0 0.0
        %798 = vmatpush.msra.mxu0 0.0
        %799 = vmatpush.msra.mxu0 0.0
        %800 = vmatpush.msra.mxu0 0.0
        %801 = vmatpush.msra.mxu0 0.0
        %802 = vmatpush.msra.mxu0 0.0
        %803 = vmatpush.msra.mxu0 0.0
        %804 = vmatpush.msra.mxu0 0.0
        %805 = vmatpush.msra.mxu0 0.0
        %806 = vmatpush.msra.mxu0 0.0
        %807 = vmatpush.msra.mxu0 0.0
        %808 = vmatpush.msra.mxu0 0.0
        %809 = vmatpush.msra.mxu0 0.0
        %810 = vmatpush.msra.mxu0 0.0
        %811 = vmatpush.msra.mxu0 0.0
        %812 = vmatpush.msra.mxu0 %v792
        %813 = vmatmul.f32.gmra.mxu0 %v795
        %v814 = vpop.f32.mrf.mxu0
        %v815 = vadd.f32 0.0, %v814
        %816 = vdwg.mxu0
        %817 = vrot.lane.b32.xlu0 %v670, 120
        %v818 = vpop.permute.xlu0 %817
        %819 = vrot.lane.b32.xlu0 %v670, 88
        %v820 = vpop.permute.xlu0 %819
        %v821 = vsel %vm683, %v818, 0
        %v823 = vsel %vm683, %v820, 0
        %825 = vmatpush.xpose.msra.mxu0 0.0
        %826 = vmatpush.xpose.msra.mxu0 0.0
        %827 = vmatpush.xpose.msra.mxu0 0.0
        %828 = vmatpush.xpose.msra.mxu0 0.0
        %829 = vmatpush.xpose.msra.mxu0 0.0
        %830 = vmatpush.xpose.msra.mxu0 0.0
        %831 = vmatpush.xpose.msra.mxu0 0.0
        %832 = vmatpush.xpose.msra.mxu0 0.0
        %833 = vmatpush.xpose.msra.mxu0 0.0
        %834 = vmatpush.xpose.msra.mxu0 0.0
        %835 = vmatpush.xpose.msra.mxu0 0.0
        %836 = vmatpush.xpose.msra.mxu0 0.0
        %837 = vmatpush.xpose.msra.mxu0 0.0
        %838 = vmatpush.xpose.msra.mxu0 0.0
        %839 = vmatpush.xpose.msra.mxu0 0.0
        %840 = vmatpush.xpose.msra.mxu0 %v823
        %841 = vmatmul.f32.gmra.mxu0 %v821
        %v842 = vpop.f32.mrf.mxu0
        %v843 = vadd.f32 0.0, %v842
        %844 = vdwg.mxu0
        %845 = vrot.lane.b32.xlu0 %v673, 120
        %v846 = vpop.permute.xlu0 %845
        %847 = vrot.lane.b32.xlu0 %v673, 88
        %v848 = vpop.permute.xlu0 %847
        %v849 = vsel %vm683, %v846, 0
        %v851 = vsel %vm683, %v848, 0
        %853 = vmatpush.xpose.msra.mxu0 0.0
        %854 = vmatpush.xpose.msra.mxu0 0.0
        %855 = vmatpush.xpose.msra.mxu0 0.0
        %856 = vmatpush.xpose.msra.mxu0 0.0
        %857 = vmatpush.xpose.msra.mxu0 0.0
        %858 = vmatpush.xpose.msra.mxu0 0.0
        %859 = vmatpush.xpose.msra.mxu0 0.0
        %860 = vmatpush.xpose.msra.mxu0 0.0
        %861 = vmatpush.xpose.msra.mxu0 0.0
        %862 = vmatpush.xpose.msra.mxu0 0.0
        %863 = vmatpush.xpose.msra.mxu0 0.0
        %864 = vmatpush.xpose.msra.mxu0 0.0
        %865 = vmatpush.xpose.msra.mxu0 0.0
        %866 = vmatpush.xpose.msra.mxu0 0.0
        %867 = vmatpush.xpose.msra.mxu0 0.0
        %868 = vmatpush.xpose.msra.mxu0 %v851
        %869 = vmatmul.f32.gmra.mxu0 %v849
        %v870 = vpop.f32.mrf.mxu0
        %v871 = vadd.f32 0.0, %v870
        %872 = vdwg.mxu0
        %v873 = vmul.f32 %v843, 0.35355338
        %v874 = vmul.f32 %v871, 0.35355338
        %v875 = vadd.f32 %v873, %v737
        %v876 = vadd.f32 %v874, %v738
        %v877 = vsel %vm683, %v875, -inf
        %878 = vmax.xlane.f32.xlu0 %v877
        %v879 = vpop.xlane.xlu0 %878
        %v880 = vsel %vm683, %v876, -inf
        %881 = vmax.xlane.f32.xlu0 %v880
        %v882 = vpop.xlane.xlu0 %881
        %v883 = vsub.f32 %v875, %v879
        %v884 = vsub.f32 %v876, %v882
        %v885 = vmul.f32 %v883, 1.442695
        %v886 = vpow.pop %v885
        %v887 = vmul.f32 %v884, 1.442695
        %v888 = vpow.pop %v887
        %v889 = vsel %vm683, %v886, 0.0
        %890 = vadd.xlane.f32.xlu0 %v889
        %v891 = vpop.xlane.xlu0 %890
        %v892 = vsel %vm683, %v888, 0.0
        %893 = vadd.xlane.f32.xlu0 %v892
        %v894 = vpop.xlane.xlu0 %893
        %v895 = vrcp.pop %v891
        %v896 = vrcp.pop %v894
        %v897 = vmul.f32 %v886, %v895
        %v898 = vmul.f32 %v888, %v896
        %899 = vrot.lane.b32.xlu0 %v670, 56
        %v900 = vpop.permute.xlu0 %899
        %v903 = vsel %vm683, %v897, 0
        %905 = vmatpush.msra.mxu0 0.0
        %906 = vmatpush.msra.mxu0 0.0
        %907 = vmatpush.msra.mxu0 0.0
        %908 = vmatpush.msra.mxu0 0.0
        %909 = vmatpush.msra.mxu0 0.0
        %910 = vmatpush.msra.mxu0 0.0
        %911 = vmatpush.msra.mxu0 0.0
        %912 = vmatpush.msra.mxu0 0.0
        %913 = vmatpush.msra.mxu0 0.0
        %914 = vmatpush.msra.mxu0 0.0
        %915 = vmatpush.msra.mxu0 0.0
        %916 = vmatpush.msra.mxu0 0.0
        %917 = vmatpush.msra.mxu0 0.0
        %918 = vmatpush.msra.mxu0 0.0
        %919 = vmatpush.msra.mxu0 0.0
        %920 = vmatpush.msra.mxu0 %v900
        %921 = vmatmul.f32.gmra.mxu0 %v903
        %v922 = vpop.f32.mrf.mxu0
        %v923 = vadd.f32 0.0, %v922
        %924 = vdwg.mxu0
        %925 = vrot.lane.b32.xlu0 %v673, 56
        %v926 = vpop.permute.xlu0 %925
        %v929 = vsel %vm683, %v898, 0
        %931 = vmatpush.msra.mxu0 0.0
        %932 = vmatpush.msra.mxu0 0.0
        %933 = vmatpush.msra.mxu0 0.0
        %934 = vmatpush.msra.mxu0 0.0
        %935 = vmatpush.msra.mxu0 0.0
        %936 = vmatpush.msra.mxu0 0.0
        %937 = vmatpush.msra.mxu0 0.0
        %938 = vmatpush.msra.mxu0 0.0
        %939 = vmatpush.msra.mxu0 0.0
        %940 = vmatpush.msra.mxu0 0.0
        %941 = vmatpush.msra.mxu0 0.0
        %942 = vmatpush.msra.mxu0 0.0
        %943 = vmatpush.msra.mxu0 0.0
        %944 = vmatpush.msra.mxu0 0.0
        %945 = vmatpush.msra.mxu0 0.0
        %946 = vmatpush.msra.mxu0 %v926
        %947 = vmatmul.f32.gmra.mxu0 %v929
        %v948 = vpop.f32.mrf.mxu0
        %v949 = vadd.f32 0.0, %v948
        %950 = vdwg.mxu0
        %951 = vrot.lane.b32.xlu0 %v670, 112
        %v952 = vpop.permute.xlu0 %951
        %953 = vrot.lane.b32.xlu0 %v670, 80
        %v954 = vpop.permute.xlu0 %953
        %v955 = vsel %vm683, %v952, 0
        %v957 = vsel %vm683, %v954, 0
        %959 = vmatpush.xpose.msra.mxu0 0.0
        %960 = vmatpush.xpose.msra.mxu0 0.0
        %961 = vmatpush.xpose.msra.mxu0 0.0
        %962 = vmatpush.xpose.msra.mxu0 0.0
        %963 = vmatpush.xpose.msra.mxu0 0.0
        %964 = vmatpush.xpose.msra.mxu0 0.0
        %965 = vmatpush.xpose.msra.mxu0 0.0
        %966 = vmatpush.xpose.msra.mxu0 0.0
        %967 = vmatpush.xpose.msra.mxu0 0.0
        %968 = vmatpush.xpose.msra.mxu0 0.0
        %969 = vmatpush.xpose.msra.mxu0 0.0
        %970 = vmatpush.xpose.msra.mxu0 0.0
        %971 = vmatpush.xpose.msra.mxu0 0.0
        %972 = vmatpush.xpose.msra.mxu0 0.0
        %973 = vmatpush.xpose.msra.mxu0 0.0
        %974 = vmatpush.xpose.msra.mxu0 %v957
        %975 = vmatmul.f32.gmra.mxu0 %v955
        %v976 = vpop.f32.mrf.mxu0
        %v977 = vadd.f32 0.0, %v976
        %978 = vdwg.mxu0
        %979 = vrot.lane.b32.xlu0 %v673, 112
        %v980 = vpop.permute.xlu0 %979
        %981 = vrot.lane.b32.xlu0 %v673, 80
        %v982 = vpop.permute.xlu0 %981
        %v983 = vsel %vm683, %v980, 0
        %v985 = vsel %vm683, %v982, 0
        %987 = vmatpush.xpose.msra.mxu0 0.0
        %988 = vmatpush.xpose.msra.mxu0 0.0
        %989 = vmatpush.xpose.msra.mxu0 0.0
        %990 = vmatpush.xpose.msra.mxu0 0.0
        %991 = vmatpush.xpose.msra.mxu0 0.0
        %992 = vmatpush.xpose.msra.mxu0 0.0
        %993 = vmatpush.xpose.msra.mxu0 0.0
        %994 = vmatpush.xpose.msra.mxu0 0.0
        %995 = vmatpush.xpose.msra.mxu0 0.0
        %996 = vmatpush.xpose.msra.mxu0 0.0
        %997 = vmatpush.xpose.msra.mxu0 0.0
        %998 = vmatpush.xpose.msra.mxu0 0.0
        %999 = vmatpush.xpose.msra.mxu0 0.0
        %1000 = vmatpush.xpose.msra.mxu0 0.0
        %1001 = vmatpush.xpose.msra.mxu0 0.0
        %1002 = vmatpush.xpose.msra.mxu0 %v985
        %1003 = vmatmul.f32.gmra.mxu0 %v983
        %v1004 = vpop.f32.mrf.mxu0
        %v1005 = vadd.f32 0.0, %v1004
        %1006 = vdwg.mxu0
        %v1007 = vmul.f32 %v977, 0.35355338
        %v1008 = vmul.f32 %v1005, 0.35355338
        %v1009 = vadd.f32 %v1007, %v737
        %v1010 = vadd.f32 %v1008, %v738
        %v1011 = vsel %vm683, %v1009, -inf
        %1012 = vmax.xlane.f32.xlu0 %v1011
        %v1013 = vpop.xlane.xlu0 %1012
        %v1014 = vsel %vm683, %v1010, -inf
        %1015 = vmax.xlane.f32.xlu0 %v1014
        %v1016 = vpop.xlane.xlu0 %1015
        %v1017 = vsub.f32 %v1009, %v1013
        %v1018 = vsub.f32 %v1010, %v1016
        %v1019 = vmul.f32 %v1017, 1.442695
        %v1020 = vpow.pop %v1019
        %v1021 = vmul.f32 %v1018, 1.442695
        %v1022 = vpow.pop %v1021
        %v1023 = vsel %vm683, %v1020, 0.0
        %1024 = vadd.xlane.f32.xlu0 %v1023
        %v1025 = vpop.xlane.xlu0 %1024
        %v1026 = vsel %vm683, %v1022, 0.0
        %1027 = vadd.xlane.f32.xlu0 %v1026
        %v1028 = vpop.xlane.xlu0 %1027
        %v1029 = vrcp.pop %v1025
        %v1030 = vrcp.pop %v1028
        %v1031 = vmul.f32 %v1020, %v1029
        %v1032 = vmul.f32 %v1022, %v1030
        %1033 = vrot.lane.b32.xlu0 %v670, 48
        %v1034 = vpop.permute.xlu0 %1033
        %v1037 = vsel %vm683, %v1031, 0
        %1039 = vmatpush.msra.mxu0 0.0
        %1040 = vmatpush.msra.mxu0 0.0
        %1041 = vmatpush.msra.mxu0 0.0
        %1042 = vmatpush.msra.mxu0 0.0
        %1043 = vmatpush.msra.mxu0 0.0
        %1044 = vmatpush.msra.mxu0 0.0
        %1045 = vmatpush.msra.mxu0 0.0
        %1046 = vmatpush.msra.mxu0 0.0
        %1047 = vmatpush.msra.mxu0 0.0
        %1048 = vmatpush.msra.mxu0 0.0
        %1049 = vmatpush.msra.mxu0 0.0
        %1050 = vmatpush.msra.mxu0 0.0
        %1051 = vmatpush.msra.mxu0 0.0
        %1052 = vmatpush.msra.mxu0 0.0
        %1053 = vmatpush.msra.mxu0 0.0
        %1054 = vmatpush.msra.mxu0 %v1034
        %1055 = vmatmul.f32.gmra.mxu0 %v1037
        %v1056 = vpop.f32.mrf.mxu0
        %v1057 = vadd.f32 0.0, %v1056
        %1058 = vdwg.mxu0
        %1059 = vrot.lane.b32.xlu0 %v673, 48
        %v1060 = vpop.permute.xlu0 %1059
        %v1063 = vsel %vm683, %v1032, 0
        %1065 = vmatpush.msra.mxu0 0.0
        %1066 = vmatpush.msra.mxu0 0.0
        %1067 = vmatpush.msra.mxu0 0.0
        %1068 = vmatpush.msra.mxu0 0.0
        %1069 = vmatpush.msra.mxu0 0.0
        %1070 = vmatpush.msra.mxu0 0.0
        %1071 = vmatpush.msra.mxu0 0.0
        %1072 = vmatpush.msra.mxu0 0.0
        %1073 = vmatpush.msra.mxu0 0.0
        %1074 = vmatpush.msra.mxu0 0.0
        %1075 = vmatpush.msra.mxu0 0.0
        %1076 = vmatpush.msra.mxu0 0.0
        %1077 = vmatpush.msra.mxu0 0.0
        %1078 = vmatpush.msra.mxu0 0.0
        %1079 = vmatpush.msra.mxu0 0.0
        %1080 = vmatpush.msra.mxu0 %v1060
        %1081 = vmatmul.f32.gmra.mxu0 %v1063
        %v1082 = vpop.f32.mrf.mxu0
        %v1083 = vadd.f32 0.0, %v1082
        %1084 = vdwg.mxu0
        %1085 = vrot.lane.b32.xlu0 %v670, 104
        %v1086 = vpop.permute.xlu0 %1085
        %1087 = vrot.lane.b32.xlu0 %v670, 72
        %v1088 = vpop.permute.xlu0 %1087
        %v1089 = vsel %vm683, %v1086, 0
        %v1091 = vsel %vm683, %v1088, 0
        %1093 = vmatpush.xpose.msra.mxu0 0.0
        %1094 = vmatpush.xpose.msra.mxu0 0.0
        %1095 = vmatpush.xpose.msra.mxu0 0.0
        %1096 = vmatpush.xpose.msra.mxu0 0.0
        %1097 = vmatpush.xpose.msra.mxu0 0.0
        %1098 = vmatpush.xpose.msra.mxu0 0.0
        %1099 = vmatpush.xpose.msra.mxu0 0.0
        %1100 = vmatpush.xpose.msra.mxu0 0.0
        %1101 = vmatpush.xpose.msra.mxu0 0.0
        %1102 = vmatpush.xpose.msra.mxu0 0.0
        %1103 = vmatpush.xpose.msra.mxu0 0.0
        %1104 = vmatpush.xpose.msra.mxu0 0.0
        %1105 = vmatpush.xpose.msra.mxu0 0.0
        %1106 = vmatpush.xpose.msra.mxu0 0.0
        %1107 = vmatpush.xpose.msra.mxu0 0.0
        %1108 = vmatpush.xpose.msra.mxu0 %v1091
        %1109 = vmatmul.f32.gmra.mxu0 %v1089
        %v1110 = vpop.f32.mrf.mxu0
        %v1111 = vadd.f32 0.0, %v1110
        %1112 = vdwg.mxu0
        %1113 = vrot.lane.b32.xlu0 %v673, 104
        %v1114 = vpop.permute.xlu0 %1113
        %1115 = vrot.lane.b32.xlu0 %v673, 72
        %v1116 = vpop.permute.xlu0 %1115
        %v1117 = vsel %vm683, %v1114, 0
        %v1119 = vsel %vm683, %v1116, 0
        %1121 = vmatpush.xpose.msra.mxu0 0.0
        %1122 = vmatpush.xpose.msra.mxu0 0.0
        %1123 = vmatpush.xpose.msra.mxu0 0.0
        %1124 = vmatpush.xpose.msra.mxu0 0.0
        %1125 = vmatpush.xpose.msra.mxu0 0.0
        %1126 = vmatpush.xpose.msra.mxu0 0.0
        %1127 = vmatpush.xpose.msra.mxu0 0.0
        %1128 = vmatpush.xpose.msra.mxu0 0.0
        %1129 = vmatpush.xpose.msra.mxu0 0.0
        %1130 = vmatpush.xpose.msra.mxu0 0.0
        %1131 = vmatpush.xpose.msra.mxu0 0.0
        %1132 = vmatpush.xpose.msra.mxu0 0.0
        %1133 = vmatpush.xpose.msra.mxu0 0.0
        %1134 = vmatpush.xpose.msra.mxu0 0.0
        %1135 = vmatpush.xpose.msra.mxu0 0.0
        %1136 = vmatpush.xpose.msra.mxu0 %v1119
        %1137 = vmatmul.f32.gmra.mxu0 %v1117
        %v1138 = vpop.f32.mrf.mxu0
        %v1139 = vadd.f32 0.0, %v1138
        %1140 = vdwg.mxu0
        %v1141 = vmul.f32 %v1111, 0.35355338
        %v1142 = vmul.f32 %v1139, 0.35355338
        %v1143 = vadd.f32 %v1141, %v737
        %v1144 = vadd.f32 %v1142, %v738
        %v1145 = vsel %vm683, %v1143, -inf
        %1146 = vmax.xlane.f32.xlu0 %v1145
        %v1147 = vpop.xlane.xlu0 %1146
        %v1148 = vsel %vm683, %v1144, -inf
        %1149 = vmax.xlane.f32.xlu0 %v1148
        %v1150 = vpop.xlane.xlu0 %1149
        %v1151 = vsub.f32 %v1143, %v1147
        %v1152 = vsub.f32 %v1144, %v1150
        %v1153 = vmul.f32 %v1151, 1.442695
        %v1154 = vpow.pop %v1153
        %v1155 = vmul.f32 %v1152, 1.442695
        %v1156 = vpow.pop %v1155
        %v1157 = vsel %vm683, %v1154, 0.0
        %1158 = vadd.xlane.f32.xlu0 %v1157
        %v1159 = vpop.xlane.xlu0 %1158
        %v1160 = vsel %vm683, %v1156, 0.0
        %1161 = vadd.xlane.f32.xlu0 %v1160
        %v1162 = vpop.xlane.xlu0 %1161
        %v1163 = vrcp.pop %v1159
        %v1164 = vrcp.pop %v1162
        %v1165 = vmul.f32 %v1154, %v1163
        %v1166 = vmul.f32 %v1156, %v1164
        %1167 = vrot.lane.b32.xlu0 %v670, 40
        %v1168 = vpop.permute.xlu0 %1167
        %v1171 = vsel %vm683, %v1165, 0
        %1173 = vmatpush.msra.mxu0 0.0
        %1174 = vmatpush.msra.mxu0 0.0
        %1175 = vmatpush.msra.mxu0 0.0
        %1176 = vmatpush.msra.mxu0 0.0
        %1177 = vmatpush.msra.mxu0 0.0
        %1178 = vmatpush.msra.mxu0 0.0
        %1179 = vmatpush.msra.mxu0 0.0
        %1180 = vmatpush.msra.mxu0 0.0
        %1181 = vmatpush.msra.mxu0 0.0
        %1182 = vmatpush.msra.mxu0 0.0
        %1183 = vmatpush.msra.mxu0 0.0
        %1184 = vmatpush.msra.mxu0 0.0
        %1185 = vmatpush.msra.mxu0 0.0
        %1186 = vmatpush.msra.mxu0 0.0
        %1187 = vmatpush.msra.mxu0 0.0
        %1188 = vmatpush.msra.mxu0 %v1168
        %1189 = vmatmul.f32.gmra.mxu0 %v1171
        %v1190 = vpop.f32.mrf.mxu0
        %v1191 = vadd.f32 0.0, %v1190
        %1192 = vdwg.mxu0
        %1193 = vrot.lane.b32.xlu0 %v673, 40
        %v1194 = vpop.permute.xlu0 %1193
        %v1197 = vsel %vm683, %v1166, 0
        %1199 = vmatpush.msra.mxu0 0.0
        %1200 = vmatpush.msra.mxu0 0.0
        %1201 = vmatpush.msra.mxu0 0.0
        %1202 = vmatpush.msra.mxu0 0.0
        %1203 = vmatpush.msra.mxu0 0.0
        %1204 = vmatpush.msra.mxu0 0.0
        %1205 = vmatpush.msra.mxu0 0.0
        %1206 = vmatpush.msra.mxu0 0.0
        %1207 = vmatpush.msra.mxu0 0.0
        %1208 = vmatpush.msra.mxu0 0.0
        %1209 = vmatpush.msra.mxu0 0.0
        %1210 = vmatpush.msra.mxu0 0.0
        %1211 = vmatpush.msra.mxu0 0.0
        %1212 = vmatpush.msra.mxu0 0.0
        %1213 = vmatpush.msra.mxu0 0.0
        %1214 = vmatpush.msra.mxu0 %v1194
        %1215 = vmatmul.f32.gmra.mxu0 %v1197
        %v1216 = vpop.f32.mrf.mxu0
        %v1217 = vadd.f32 0.0, %v1216
        %1218 = vdwg.mxu0
        %1221 = vrot.lane.b32.xlu0 %v923, 8
        %v1222 = vpop.permute.xlu0 %1221
        %1223 = vrot.lane.b32.xlu0 %v949, 8
        %v1224 = vpop.permute.xlu0 %1223
        %1229 = vrot.lane.b32.xlu0 %v1057, 16
        %v1230 = vpop.permute.xlu0 %1229
        %1231 = vrot.lane.b32.xlu0 %v1083, 16
        %v1232 = vpop.permute.xlu0 %1231
        %1237 = vrot.lane.b32.xlu0 %v1191, 24
        %v1238 = vpop.permute.xlu0 %1237
        %1239 = vrot.lane.b32.xlu0 %v1217, 24
        %v1240 = vpop.permute.xlu0 %1239
        %v1243 = vsel %vm683, %v789, %v1222
        %v1244 = vsel %vm683, %v815, %v1224
        %vm1245 = vcmask 130048
        %v1246 = vsel %vm1245, %v1243, %v1230
        %v1247 = vsel %vm1245, %v1244, %v1232
        %vm1248 = vcmask 195584
        %v1249 = vsel %vm1248, %v1246, %v1238
        %v1250 = vsel %vm1248, %v1247, %v1240
        %v1251 = vld [vmem:[%s594] sm:$0xff]
        %v1252 = vld [vmem:[%s594 + $0x8] sm:$0xff]
        %v1253 = vld [vmem:[%s594 + $0x10] sm:$0xff]
        %v1254 = vld [vmem:[%s594 + $0x18] sm:$0xff]
        %v1255 = vld [vmem:[%s597] sm:$0x1]
        %v1257 = vperm.slane %v1255, 0
        %v1260 = vsel %vm645, %v1249, 0
        %v1263 = vsel %vm645, %v1250, 0
        %1265 = vmatpush.msra.mxu0 0.0
        %1266 = vmatpush.msra.mxu0 0.0
        %1267 = vmatpush.msra.mxu0 0.0
        %1268 = vmatpush.msra.mxu0 0.0
        %1269 = vmatpush.msra.mxu0 0.0
        %1270 = vmatpush.msra.mxu0 0.0
        %1271 = vmatpush.msra.mxu0 0.0
        %1272 = vmatpush.msra.mxu0 0.0
        %1273 = vmatpush.msra.mxu0 0.0
        %1274 = vmatpush.msra.mxu0 0.0
        %1275 = vmatpush.msra.mxu0 0.0
        %1276 = vmatpush.msra.mxu0 0.0
        %1277 = vmatpush.msra.mxu0 %v1254
        %1278 = vmatpush.msra.mxu0 %v1253
        %1279 = vmatpush.msra.mxu0 %v1252
        %1280 = vmatpush.msra.mxu0 %v1251
        %1281 = vmatmul.f32.gmra.mxu0 %v1260
        %v1282 = vpop.f32.mrf.mxu0
        %v1283 = vadd.f32 %v1257, %v1282
        %1284 = vmatmul.f32.gmra.mxu0 %v1263
        %v1285 = vpop.f32.mrf.mxu0
        %v1286 = vadd.f32 %v1257, %v1285
        %1287 = vdwg.mxu0
        %v1288 = vadd.f32 %v635, %v1283
        %v1289 = vadd.f32 %v636, %v1286
        %v1290 = vld [vmem:[%s600] sm:$0x1]
        %v1291 = vld [vmem:[%s603] sm:$0x1]
        %v1292 = vsel %vm645, %v1288, 0.0
        %1293 = vadd.xlane.f32.xlu0 %v1292
        %v1294 = vpop.xlane.xlu0 %1293
        %v1295 = vsel %vm645, %v1289, 0.0
        %1296 = vadd.xlane.f32.xlu0 %v1295
        %v1297 = vpop.xlane.xlu0 %1296
        %v1298 = vrcp.pop 32.0
        %v1299 = vmul.f32 32.0, %v1298
        %v1300 = vsub.f32 1.0, %v1299
        %v1301 = vmul.f32 %v1298, %v1300
        %v1302 = vadd.f32 %v1298, %v1301
        %vm1303 = vweird.f32 %v1298
        %v1304 = vsel %vm1303, %v1298, %v1302
        %v1305 = vmul.f32 %v1294, %v1304
        %v1306 = vmul.f32 %v1297, %v1304
        %v1307 = vsub.f32 %v1288, %v1305
        %v1308 = vsub.f32 %v1289, %v1306
        %v1309 = vmul.f32 %v1307, %v1307
        %v1310 = vmul.f32 %v1308, %v1308
        %v1311 = vsel %vm645, %v1309, 0.0
        %1312 = vadd.xlane.f32.xlu0 %v1311
        %v1313 = vpop.xlane.xlu0 %1312
        %v1314 = vsel %vm645, %v1310, 0.0
        %1315 = vadd.xlane.f32.xlu0 %v1314
        %v1316 = vpop.xlane.xlu0 %1315
        %v1317 = vmul.f32 %v1313, %v1304
        %v1318 = vmul.f32 %v1316, %v1304
        %v1319 = vadd.f32 %v1317, 1e-12
        %v1320 = vadd.f32 %v1318, 1e-12
        %v1321 = vrsqrt.pop %v1319
        %v1322 = vmul.f32 %v1321, %v1319
        %v1323 = vmul.f32 %v1322, %v1321
        %v1324 = vmul.f32 0.5, %v1323
        %v1325 = vsub.f32 1.5, %v1324
        %v1326 = vmul.f32 %v1321, %v1325
        %vm1327 = vweird.f32 %v1319
        %vm1328 = vweird.f32 %v1321
        %vm1329 = vmor %vm1327, %vm1328
        %v1330 = vsel %vm1329, %v1321, %v1326
        %v1331 = vrsqrt.pop %v1320
        %v1332 = vmul.f32 %v1331, %v1320
        %v1333 = vmul.f32 %v1332, %v1331
        %v1334 = vmul.f32 0.5, %v1333
        %v1335 = vsub.f32 1.5, %v1334
        %v1336 = vmul.f32 %v1331, %v1335
        %vm1337 = vweird.f32 %v1320
        %vm1338 = vweird.f32 %v1331
        %vm1339 = vmor %vm1337, %vm1338
        %v1340 = vsel %vm1339, %v1331, %v1336
        %v1341 = vmul.f32 %v1307, %v1330
        %v1342 = vmul.f32 %v1308, %v1340
        %v1344 = vperm.slane %v1290, 0
        %v1346 = vmul.f32 %v1341, %v1344
        %v1347 = vmul.f32 %v1342, %v1344
        %v1349 = vperm.slane %v1291, 0
        %v1351 = vadd.f32 %v1346, %v1349
        %v1352 = vadd.f32 %v1347, %v1349
        %v1353 = vld [vmem:[%s608] sm:$0xff]
        %v1354 = vld [vmem:[%s608 + $0x8] sm:$0xff]
        %v1355 = vld [vmem:[%s608 + $0x10] sm:$0xff]
        %v1356 = vld [vmem:[%s608 + $0x18] sm:$0xff]
        %v1357 = vld [vmem:[%s611] sm:$0x1]
        %v1359 = vperm.slane %v1357, 0
        %v1362 = vsel %vm645, %v1351, 0
        %v1365 = vsel %vm645, %v1352, 0
        %1367 = vmatpush.msra.mxu0 0.0
        %1368 = vmatpush.msra.mxu0 0.0
        %1369 = vmatpush.msra.mxu0 0.0
        %1370 = vmatpush.msra.mxu0 0.0
        %1371 = vmatpush.msra.mxu0 0.0
        %1372 = vmatpush.msra.mxu0 0.0
        %1373 = vmatpush.msra.mxu0 0.0
        %1374 = vmatpush.msra.mxu0 0.0
        %1375 = vmatpush.msra.mxu0 0.0
        %1376 = vmatpush.msra.mxu0 0.0
        %1377 = vmatpush.msra.mxu0 0.0
        %1378 = vmatpush.msra.mxu0 0.0
        %1379 = vmatpush.msra.mxu0 %v1356
        %1380 = vmatpush.msra.mxu0 %v1355
        %1381 = vmatpush.msra.mxu0 %v1354
        %1382 = vmatpush.msra.mxu0 %v1353
        %1383 = vmatmul.f32.gmra.mxu0 %v1362
        %v1384 = vpop.f32.mrf.mxu0
        %v1385 = vadd.f32 %v1359, %v1384
        %1386 = vmatmul.f32.gmra.mxu0 %v1365
        %v1387 = vpop.f32.mrf.mxu0
        %v1388 = vadd.f32 %v1359, %v1387
        %1389 = vdwg.mxu0
        %v1390 = vmul.f32 %v1385, %v1385
        %v1391 = vmul.f32 %v1388, %v1388
        %v1392 = vmul.f32 %v1385, %v1390
        %v1393 = vmul.f32 %v1388, %v1391
        %v1394 = vmul.f32 %v1392, 0.044715
        %v1395 = vmul.f32 %v1393, 0.044715
        %v1396 = vadd.f32 %v1385, %v1394
        %v1397 = vadd.f32 %v1388, %v1395
        %v1398 = vmul.f32 %v1396, 0.7978846
        %v1399 = vmul.f32 %v1397, 0.7978846
        %v1400 = vtanh.pop %v1398
        %v1401 = vtanh.pop %v1399
        %v1402 = vadd.f32 %v1400, 1.0
        %v1403 = vadd.f32 %v1401, 1.0
        %v1404 = vmul.f32 %v1402, 0.5
        %v1405 = vmul.f32 %v1403, 0.5
        %v1406 = vmul.f32 %v1385, %v1404
        %v1407 = vmul.f32 %v1388, %v1405
        %v1408 = vld [vmem:[%s616] sm:$0xff]
        %v1409 = vld [vmem:[%s616 + $0x8] sm:$0xff]
        %v1410 = vld [vmem:[%s616 + $0x10] sm:$0xff]
        %v1411 = vld [vmem:[%s616 + $0x18] sm:$0xff]
        %v1412 = vld [vmem:[%s616 + $0x20] sm:$0xff]
        %v1413 = vld [vmem:[%s616 + $0x28] sm:$0xff]
        %v1414 = vld [vmem:[%s616 + $0x30] sm:$0xff]
        %v1415 = vld [vmem:[%s616 + $0x38] sm:$0xff]
        %v1416 = vld [vmem:[%s619] sm:$0x1]
        %v1418 = vperm.slane %v1416, 0
        %vm1420 = vcmask 523264
        %v1422 = vsel %vm1420, %v1406, 0
        %v1425 = vsel %vm1420, %v1407, 0
        %1427 = vmatpush.msra.mxu0 0.0
        %1428 = vmatpush.msra.mxu0 0.0
        %1429 = vmatpush.msra.mxu0 0.0
        %1430 = vmatpush.msra.mxu0 0.0
        %1431 = vmatpush.msra.mxu0 0.0
        %1432 = vmatpush.msra.mxu0 0.0
        %1433 = vmatpush.msra.mxu0 0.0
        %1434 = vmatpush.msra.mxu0 0.0
        %1435 = vmatpush.msra.mxu0 %v1415
        %1436 = vmatpush.msra.mxu0 %v1414
        %1437 = vmatpush.msra.mxu0 %v1413
        %1438 = vmatpush.msra.mxu0 %v1412
        %1439 = vmatpush.msra.mxu0 %v1411
        %1440 = vmatpush.msra.mxu0 %v1410
        %1441 = vmatpush.msra.mxu0 %v1409
        %1442 = vmatpush.msra.mxu0 %v1408
        %1443 = vmatmul.f32.gmra.mxu0 %v1422
        %v1444 = vpop.f32.mrf.mxu0
        %v1445 = vadd.f32 %v1418, %v1444
        %1446 = vmatmul.f32.gmra.mxu0 %v1425
        %v1447 = vpop.f32.mrf.mxu0
        %v1448 = vadd.f32 %v1418, %v1447
        %1449 = vdwg.mxu0
        %v1450 = vadd.f32 %v1351, %v1445
        %v1451 = vadd.f32 %v1352, %v1448
        %v1452 = vld [vmem:[%s622] sm:$0x1]
        %v1453 = vld [vmem:[%s625] sm:$0x1]
        %v1454 = vsel %vm645, %v1450, 0.0
        %1455 = vadd.xlane.f32.xlu0 %v1454
        %v1456 = vpop.xlane.xlu0 %1455
        %v1457 = vsel %vm645, %v1451, 0.0
        %1458 = vadd.xlane.f32.xlu0 %v1457
        %v1459 = vpop.xlane.xlu0 %1458
        %v1460 = vmul.f32 %v1456, %v1304
        %v1461 = vmul.f32 %v1459, %v1304
        %v1462 = vsub.f32 %v1450, %v1460
        %v1463 = vsub.f32 %v1451, %v1461
        %v1464 = vmul.f32 %v1462, %v1462
        %v1465 = vmul.f32 %v1463, %v1463
        %v1466 = vsel %vm645, %v1464, 0.0
        %1467 = vadd.xlane.f32.xlu0 %v1466
        %v1468 = vpop.xlane.xlu0 %1467
        %v1469 = vsel %vm645, %v1465, 0.0
        %1470 = vadd.xlane.f32.xlu0 %v1469
        %v1471 = vpop.xlane.xlu0 %1470
        %v1472 = vmul.f32 %v1468, %v1304
        %v1473 = vmul.f32 %v1471, %v1304
        %v1474 = vadd.f32 %v1472, 1e-12
        %v1475 = vadd.f32 %v1473, 1e-12
        %v1476 = vrsqrt.pop %v1474
        %v1477 = vmul.f32 %v1476, %v1474
        %v1478 = vmul.f32 %v1477, %v1476
        %v1479 = vmul.f32 0.5, %v1478
        %v1480 = vsub.f32 1.5, %v1479
        %v1481 = vmul.f32 %v1476, %v1480
        %vm1482 = vweird.f32 %v1474
        %vm1483 = vweird.f32 %v1476
        %vm1484 = vmor %vm1482, %vm1483
        %v1485 = vsel %vm1484, %v1476, %v1481
        %v1486 = vrsqrt.pop %v1475
        %v1487 = vmul.f32 %v1486, %v1475
        %v1488 = vmul.f32 %v1487, %v1486
        %v1489 = vmul.f32 0.5, %v1488
        %v1490 = vsub.f32 1.5, %v1489
        %v1491 = vmul.f32 %v1486, %v1490
        %vm1492 = vweird.f32 %v1475
        %vm1493 = vweird.f32 %v1486
        %vm1494 = vmor %vm1492, %vm1493
        %v1495 = vsel %vm1494, %v1486, %v1491
        %v1496 = vmul.f32 %v1462, %v1485
        %v1497 = vmul.f32 %v1463, %v1495
        %v1499 = vperm.slane %v1452, 0
        %v1501 = vmul.f32 %v1496, %v1499
        %v1502 = vmul.f32 %v1497, %v1499
        %v1504 = vperm.slane %v1453, 0
        %v1506 = vadd.f32 %v1501, %v1504
        %v1507 = vadd.f32 %v1502, %v1504
        %1508 = vst.msk [vmem:[#allocation2] sm:$0xff] %vm645, %v1506
        %1509 = vst.msk [vmem:[#allocation2 + $0x8] sm:$0xff] %vm645, %v1507
        %p1510 = scmp.eq.s32.totalorder %s26, 1
        // Predicated region
        $region81: #{bert_forward.1} parent=75 // pred_check
          %p1511 = pneg %p1510
        $region82: #{bert_forward.1} parent=75 // pred_check_branch
          %1513 = sbr.rel (%p1511) target = $region84
        $region83: #{bert_forward.1} parent=75 // pred_region
          %v1514 = vsel %vm645, %v1506, 0.0
          %v1515 = vrot.slane %v1514, 4
          %v1516 = vadd.f32 %v1514, %v1515
          %v1517 = vrot.slane %v1516, 2
          %v1518 = vadd.f32 %v1516, %v1517
          %v1519 = vrot.slane %v1518, 1
          %v1520 = vadd.f32 %v1518, %v1519
          %v1521 = vsel %vm645, %v1507, 0.0
          %v1522 = vrot.slane %v1521, 4
          %v1523 = vadd.f32 %v1521, %v1522
          %v1524 = vrot.slane %v1523, 2
          %v1525 = vadd.f32 %v1523, %v1524
          %v1526 = vrot.slane %v1525, 1
          %v1527 = vadd.f32 %v1525, %v1526
          %v1528 = vrcp.pop 8.0
          %v1529 = vmul.f32 8.0, %v1528
          %v1530 = vsub.f32 1.0, %v1529
          %v1531 = vmul.f32 %v1528, %v1530
          %v1532 = vadd.f32 %v1528, %v1531
          %vm1533 = vweird.f32 %v1528
          %v1534 = vsel %vm1533, %v1528, %v1532
          %v1535 = vmul.f32 %v1520, %v1534
          %v1536 = vmul.f32 %v1527, %v1534
          %vm1539 = vcmask 1041409
          %v1540 = vsel %vm1539, %v1536, %v1535
          %vm1542 = vcmask 254976
          %1543 = vst.msk [vmem:[#allocation3] sm:$0x3] %vm1542, %v1540
        $region84: #{bert_forward.1} parent=75 // pred_fallthru
          _
        // Predicated region
        $region85: #{bert_forward.1} parent=75 // pred_check
          %p1544 = pneg %p393
        $region86: #{bert_forward.1} parent=75 // pred_check_branch
          %1546 = sbr.rel (%p1544) target = $region88
        $region87: #{bert_forward.1} parent=75 // pred_region
          %1548 = vsyncadd [#allocation4], 0
          %s1550 = sshll.u32 [#allocation3], 4
          %s1551 = int_to_ptr.vmem [resolvable:$true] %s1550
          %s1552 = sshll.u32 %s14, 4
          %s1553 = int_to_ptr.hbm [resolvable:$true] %s1552
          %1555 = dma.vmem_to_hbm [thread:$0]  %s1551, 32, %s1553, [#allocation4]
        $region88: #{bert_forward.1} parent=75 // pred_fallthru
          _
        // Predicated region
        $region89: #{bert_forward.1} parent=75 // pred_check
          %p1556 = pneg %p393
        $region90: #{bert_forward.1} parent=75 // pred_check_branch
          %1558 = sbr.rel (%p1556) target = $region92
        $region91: #{bert_forward.1} parent=75 // pred_region
          %1560 = dma.done [#allocation4], 32
        $region92: #{bert_forward.1} parent=75 // pred_fallthru
          _
      $region76: #{bert_forward.1} parent=5 // pred_fallthru
        _
      %p1561 = scmp.le.s32.totalorder 2, %s21
      // Predicated region
      $region93: #{bert_forward.1} parent=5 // pred_check
        %p1562 = pneg %p1561
      $region94: #{bert_forward.1} parent=5 // pred_check_branch
        %1564 = sbr.rel (%p1562) target = $region96
      $region95: #{bert_forward.1} parent=5 // pred_region
        %s1565 = ssub.s32 %s21, 2
      $region96: #{bert_forward.1} parent=5 // pred_fallthru
        _
    $region6: #{bert_forward.1} parent=1 // loop_footer
      %s25 = sadd.s32 1, %s21
    $region7: #{bert_forward.1} parent=1 // loop_footer_branch
      %20 = sbr.rel target = $region3
    $region8: #{bert_forward.1} parent=1 // loop_exit
      _
    %1566 = vsyncpa [#allocation4], 1
    %s1567 = scalar_lea.sflag [#allocation4], 1
    %1568 = vsyncpa %s1567, 1

</llo_original>
